<compile_context>
chip_gen: v7x
topology: tpu7x:2x2x1
jax: 0.10.0
libtpu: 0.0.40
codegen_flags: <defaults>
</compile_context>

<pallas_src>
import functools

import jax
import jax.numpy as jnp
import numpy as np
from jax import lax
from jax.experimental import pallas as pl
from jax.experimental.pallas import tpu as pltpu


def _round_up(x, m):
    return -(-x // m) * m


def _interp2_kernel(v_ref, xq_ref, yq_ref, out_ref, *, channels, height,
                    width, clamp):
    # v_ref:   (1, C*H, W) f32 -- full pixel slab of one batch (channels-first)
    # xq_ref:  (1, 1, TQ)  f32 -- query x coordinates (lane-dense tile)
    # yq_ref:  (1, 1, TQ)  f32 -- query y coordinates
    # out_ref: (1, C, TQ)  f32
    C, H, W = channels, height, width
    TQ = out_ref.shape[2]

    xq = xq_ref[0]            # (1, TQ)
    yq = yq_ref[0]            # (1, TQ)

    if clamp:
        xq = jnp.clip(xq, 0.0, float(W - 1))
        yq = jnp.clip(yq, 0.0, float(H - 1))

    # floor + clamp corner coordinates (matches torch.clamp(torch.floor(...)))
    x0f = jnp.clip(jnp.floor(xq), 0.0, float(W - 1))
    y0f = jnp.clip(jnp.floor(yq), 0.0, float(H - 1))
    x0 = x0f.astype(jnp.int32)
    y0 = y0f.astype(jnp.int32)
    x1 = jnp.minimum(x0 + 1, W - 1)
    y1 = jnp.minimum(y0 + 1, H - 1)

    # fractional offsets and per-axis corner weights, all (1, TQ)
    fx = xq - x0f
    fy = yq - y0f
    c0 = 1.0 - fx
    c1 = fx
    r0 = 1.0 - fy
    r1 = fy

    if not clamp:
        # The output is linear in v, so masking the row weights == masking the
        # output (same as the reference's invalid*0 + (1-invalid)*values).
        valid = ((xq >= 0.0) & (xq < float(W)) &
                 (yq >= 0.0) & (yq < float(H))).astype(jnp.float32)
        r0 = r0 * valid
        r1 = r1 * valid

    # Pre-fold duplicate-corner weights (clamped right/bottom edges) on the
    # (1, TQ) vectors so the selection matrices below can use nested selects
    # without losing the second corner's contribution.
    c0 = jnp.where(x1 == x0, c0 + c1, c0)
    r0 = jnp.where(y1 == y0, r0 + r1, r0)

    # Column-weight matrix (W, TQ) and row-weight matrix (H, TQ):
    # each query column has at most two nonzeros.
    wi = lax.broadcasted_iota(jnp.int32, (W, TQ), 0)
    col = jnp.where(wi == x0, c0, jnp.where(wi == x1, c1, 0.0))
    hi = lax.broadcasted_iota(jnp.int32, (H, TQ), 0)
    row = jnp.where(hi == y0, r0, jnp.where(hi == y1, r1, 0.0))

    # Step 1 (MXU): contract over W.  v_ref[0] is (C*H, W).
    t = jnp.dot(v_ref[0], col, preferred_element_type=jnp.float32)  # (C*H, TQ)

    # Step 2 (VPU): weight by the row selection and reduce over H.
    t = t.reshape(C, H, TQ) * row[jnp.newaxis, :, :]                 # (C, H, TQ)
    out_ref[0] = jnp.sum(t, axis=1).astype(out_ref.dtype)            # (C, TQ)


def _vmem_estimate(C, H, W, tq):
    """Rough per-grid-step VMEM footprint in bytes."""
    c_pad = _round_up(C, 8)
    v_slab = C * H * W * 4                        # resident pixel slab (1 buffer)
    q_blk = 2 * 2 * 8 * tq * 4                    # xq/yq blocks, double-buffered
    o_blk = 2 * c_pad * tq * 4                    # out block, double-buffered
    tmp = (2 * (H + W) + 2 * C * H) * tq * 4      # iotas+weights, matmul result, product
    return v_slab + q_blk + o_blk + tmp


def _pick_query_tile(C, H, W, hw, budget_bytes=24 << 20):
    """Largest lane-aligned query tile whose per-step footprint fits the budget."""
    hw128 = _round_up(hw, 128)
    best = 128
    for tq in (128, 256, 512, 1024):
        if tq <= hw128 and hw128 % tq == 0 and \
                _vmem_estimate(C, H, W, tq) <= budget_bytes:
            best = tq
    return best


def interp2_pallas(v, xq, yq, clamp=False):
    """Bilinear interpolation. v: (B,C,H,W), xq/yq: (B,H,W) -> (B,C,H,W)."""
    B, C, H, W = v.shape
    HW = H * W

    TQ = _pick_query_tile(C, H, W, HW)
    hwq = _round_up(HW, TQ)          # pad query count -> lane-dense output blocks
    nq = hwq // TQ

    # channels-first flatten: NO HBM transposes, just free reshapes.
    v_flat = v.reshape(B, C * H, W).astype(jnp.float32)
    xq_flat = xq.reshape(B, 1, HW).astype(jnp.float32)
    yq_flat = yq.reshape(B, 1, HW).astype(jnp.float32)
    if hwq != HW:
        pad = ((0, 0), (0, 0), (0, hwq - HW))
        # 0.0 is a valid in-range coordinate, so padded queries are harmless
        # (their outputs are sliced off below).
        xq_flat = jnp.pad(xq_flat, pad)
        yq_flat = jnp.pad(yq_flat, pad)

    kernel = functools.partial(_interp2_kernel, channels=C, height=H, width=W,
                               clamp=clamp)

    est = _vmem_estimate(C, H, W, TQ)
    vmem_limit = int(min(max(2 * est + (8 << 20), 32 << 20), 64 << 20))
    # TODO(synk): for images where the C*H*W slab alone approaches VMEM, add an
    # H-chunk grid axis (marked "arbitrary") with an f32 accumulator scratch.

    dim_sem = ("parallel", "parallel" if B == 1 else "arbitrary")

    def build(single_buffer_v):
        v_kwargs = {"pipeline_mode": pl.Buffered(1)} if single_buffer_v else {}
        return pl.pallas_call(
            kernel,
            out_shape=jax.ShapeDtypeStruct((B, C, hwq), jnp.float32),
            grid_spec=pltpu.PrefetchScalarGridSpec(
                num_scalar_prefetch=0,
                grid=(B, nq),
                in_specs=[
                    # pixel slab: constant along the query-tile axis -> DMA'd
                    # once per batch, stays resident across query tiles.
                    pl.BlockSpec((1, C * H, W), lambda b, qi: (b, 0, 0),
                                 **v_kwargs),
                    pl.BlockSpec((1, 1, TQ), lambda b, qi: (b, 0, qi)),
                    pl.BlockSpec((1, 1, TQ), lambda b, qi: (b, 0, qi)),
                ],
                out_specs=pl.BlockSpec((1, C, TQ), lambda b, qi: (b, 0, qi)),
            ),
            compiler_params=pltpu.CompilerParams(
                dimension_semantics=dim_sem,
                vmem_limit_bytes=vmem_limit),
        )

    try:
        out = build(single_buffer_v=True)(v_flat, xq_flat, yq_flat)
    except Exception:
        # Fallback if this Pallas version rejects pl.Buffered(buffer_count=1).
        out = build(single_buffer_v=False)(v_flat, xq_flat, yq_flat)

    out = out[:, :, :HW].reshape(B, C, H, W)
    return out.astype(v.dtype)


def interp2_ref(v, xq, yq, clamp=False):
    """Pure-JAX reference matching the PyTorch module's forward semantics."""
    B, C, H, W = v.shape
    if clamp:
        xq = jnp.clip(xq, 0, W - 1)
        yq = jnp.clip(yq, 0, H - 1)
    x0 = jnp.clip(jnp.floor(xq).astype(jnp.int32), 0, W - 1)
    y0 = jnp.clip(jnp.floor(yq).astype(jnp.int32), 0, H - 1)
    x1 = jnp.clip(x0 + 1, 0, W - 1)
    y1 = jnp.clip(y0 + 1, 0, H - 1)
    bidx = jnp.arange(B)[:, None, None]
    v_bhwc = jnp.transpose(v, (0, 2, 3, 1))
    v00 = v_bhwc[bidx, y0, x0]  # (B,H,W,C)
    v01 = v_bhwc[bidx, y0, x1]
    v10 = v_bhwc[bidx, y1, x0]
    v11 = v_bhwc[bidx, y1, x1]
    x = xq - x0.astype(jnp.float32)
    y = yq - y0.astype(jnp.float32)
    w00 = ((1.0 - y) * (1.0 - x))[..., None]
    w01 = ((1.0 - y) * x)[..., None]
    w10 = (y * (1.0 - x))[..., None]
    w11 = (y * x)[..., None]
    vals = v00 * w00 + v01 * w01 + v10 * w10 + v11 * w11  # (B,H,W,C)
    vals = jnp.transpose(vals, (0, 3, 1, 2))
    if clamp:
        return vals
    invalid = ((xq < 0) | (xq >= W) | (yq < 0) | (yq >= H))[:, None, :, :]
    return jnp.where(invalid, jnp.zeros_like(vals), vals)


if __name__ == "__main__":
    B, C, H, W = 2, 4, 16, 16
    key = jax.random.PRNGKey(0)
    kv, kx, ky = jax.random.split(key, 3)

    v = jax.random.normal(kv, (B, C, H, W), dtype=jnp.float32)
    # query coordinates, including some out-of-range samples to exercise masking
    xq = jax.random.uniform(kx, (B, H, W), minval=-2.0, maxval=W + 1.0,
                            dtype=jnp.float32)
    yq = jax.random.uniform(ky, (B, H, W), minval=-2.0, maxval=H + 1.0,
                            dtype=jnp.float32)

    out = jax.block_until_ready(interp2_pallas(v, xq, yq, clamp=False))
    ref = jax.block_until_ready(interp2_ref(v, xq, yq, clamp=False))
    np.testing.assert_allclose(np.asarray(out), np.asarray(ref),
                               rtol=1e-5, atol=1e-5)

    # also exercise the clamp=True path
    out_c = jax.block_until_ready(interp2_pallas(v, xq, yq, clamp=True))
    ref_c = jax.block_until_ready(interp2_ref(v, xq, yq, clamp=True))
    np.testing.assert_allclose(np.asarray(out_c), np.asarray(ref_c),
                               rtol=1e-5, atol=1e-5)

    assert out.shape == (B, C, H, W)
    print("KERNEL_OK")
</pallas_src>

<mosaic_0001>
module attributes {stable_mosaic.version = 11 : i64} {
  func.func @_interp2_kernel(%arg0: i32, %arg1: i32, %arg2: memref<1x64x16xf32, #tpu.memory_space<vmem>>, %arg3: memref<1x1x256xf32, #tpu.memory_space<vmem>>, %arg4: memref<1x1x256xf32, #tpu.memory_space<vmem>>, %arg5: memref<1x4x256xf32, #tpu.memory_space<vmem>>) attributes {dimension_semantics = [#tpu.dimension_semantics<parallel>, #tpu.dimension_semantics<arbitrary>], iteration_bounds = array<i64: 2, 1>, scalar_prefetch = 0 : i64, scratch_operands = 0 : i64, tpu.core_type = #tpu.core_type<tc>, window_params = [{pipeline_mode = #tpu.pipeline_mode<synchronous>, transform_indices = @transform_0, window_bounds = array<i64: 1, 64, 16>}, {transform_indices = @transform_1, window_bounds = array<i64: 1, 1, 256>}, {transform_indices = @transform_2, window_bounds = array<i64: 1, 1, 256>}, {transform_indices = @transform_3, window_bounds = array<i64: 1, 4, 256>}]} {
    %c0 = arith.constant 0 : index
    %c0_0 = arith.constant 0 : index
    %c0_1 = arith.constant 0 : index
    %0 = vector.load %arg3[%c0, %c0_0, %c0_1] : memref<1x1x256xf32, #tpu.memory_space<vmem>>, vector<1x1x256xf32>
    %1 = vector.shape_cast %0 : vector<1x1x256xf32> to vector<1x256xf32>
    %c0_2 = arith.constant 0 : index
    %c0_3 = arith.constant 0 : index
    %c0_4 = arith.constant 0 : index
    %2 = vector.load %arg4[%c0_2, %c0_3, %c0_4] : memref<1x1x256xf32, #tpu.memory_space<vmem>>, vector<1x1x256xf32>
    %3 = vector.shape_cast %2 : vector<1x1x256xf32> to vector<1x256xf32>
    %4 = math.floor %1 : vector<1x256xf32>
    %cst = arith.constant 0.000000e+00 : f32
    %cst_5 = arith.constant 1.500000e+01 : f32
    %5 = vector.broadcast %cst : f32 to vector<1x256xf32>
    %6 = arith.maximumf %5, %4 : vector<1x256xf32>
    %7 = vector.broadcast %cst_5 : f32 to vector<1x256xf32>
    %8 = arith.minimumf %7, %6 : vector<1x256xf32>
    %9 = math.floor %3 : vector<1x256xf32>
    %cst_6 = arith.constant 0.000000e+00 : f32
    %cst_7 = arith.constant 1.500000e+01 : f32
    %10 = vector.broadcast %cst_6 : f32 to vector<1x256xf32>
    %11 = arith.maximumf %10, %9 : vector<1x256xf32>
    %12 = vector.broadcast %cst_7 : f32 to vector<1x256xf32>
    %13 = arith.minimumf %12, %11 : vector<1x256xf32>
    %14 = arith.fptosi %8 : vector<1x256xf32> to vector<1x256xi32>
    %15 = arith.fptosi %13 : vector<1x256xf32> to vector<1x256xi32>
    %c1_i32 = arith.constant 1 : i32
    %16 = vector.broadcast %c1_i32 : i32 to vector<1x256xi32>
    %17 = arith.addi %14, %16 : vector<1x256xi32>
    %c15_i32 = arith.constant 15 : i32
    %18 = vector.broadcast %c15_i32 : i32 to vector<1x256xi32>
    %19 = arith.minsi %17, %18 : vector<1x256xi32>
    %c1_i32_8 = arith.constant 1 : i32
    %20 = vector.broadcast %c1_i32_8 : i32 to vector<1x256xi32>
    %21 = arith.addi %15, %20 : vector<1x256xi32>
    %c15_i32_9 = arith.constant 15 : i32
    %22 = vector.broadcast %c15_i32_9 : i32 to vector<1x256xi32>
    %23 = arith.minsi %21, %22 : vector<1x256xi32>
    %24 = arith.subf %1, %8 : vector<1x256xf32>
    %25 = arith.subf %3, %13 : vector<1x256xf32>
    %cst_10 = arith.constant 1.000000e+00 : f32
    %26 = vector.broadcast %cst_10 : f32 to vector<1x256xf32>
    %27 = arith.subf %26, %24 : vector<1x256xf32>
    %cst_11 = arith.constant 1.000000e+00 : f32
    %28 = vector.broadcast %cst_11 : f32 to vector<1x256xf32>
    %29 = arith.subf %28, %25 : vector<1x256xf32>
    %cst_12 = arith.constant 0.000000e+00 : f32
    %30 = vector.broadcast %cst_12 : f32 to vector<1x256xf32>
    %31 = arith.cmpf oge, %1, %30 : vector<1x256xf32>
    %cst_13 = arith.constant 1.600000e+01 : f32
    %32 = vector.broadcast %cst_13 : f32 to vector<1x256xf32>
    %33 = arith.cmpf olt, %1, %32 : vector<1x256xf32>
    %34 = arith.andi %31, %33 : vector<1x256xi1>
    %cst_14 = arith.constant 0.000000e+00 : f32
    %35 = vector.broadcast %cst_14 : f32 to vector<1x256xf32>
    %36 = arith.cmpf oge, %3, %35 : vector<1x256xf32>
    %37 = arith.andi %34, %36 : vector<1x256xi1>
    %cst_15 = arith.constant 1.600000e+01 : f32
    %38 = vector.broadcast %cst_15 : f32 to vector<1x256xf32>
    %39 = arith.cmpf olt, %3, %38 : vector<1x256xf32>
    %40 = arith.andi %37, %39 : vector<1x256xi1>
    %41 = arith.extui %40 : vector<1x256xi1> to vector<1x256xi32>
    %42 = arith.sitofp %41 : vector<1x256xi32> to vector<1x256xf32>
    %43 = arith.mulf %29, %42 : vector<1x256xf32>
    %44 = arith.mulf %25, %42 : vector<1x256xf32>
    %45 = arith.cmpi eq, %19, %14 : vector<1x256xi32>
    %46 = arith.addf %27, %24 : vector<1x256xf32>
    %47 = arith.select %45, %46, %27 : vector<1x256xi1>, vector<1x256xf32>
    %48 = arith.cmpi eq, %23, %15 : vector<1x256xi32>
    %49 = arith.addf %43, %44 : vector<1x256xf32>
    %50 = arith.select %48, %49, %43 : vector<1x256xi1>, vector<1x256xf32>
    %51 = tpu.iota {dimensions = array<i32: 0>} : vector<16x256xi32>
    %52 = vector.broadcast %14 : vector<1x256xi32> to vector<16x256xi32>
    %53 = arith.cmpi eq, %51, %52 : vector<16x256xi32>
    %54 = vector.broadcast %19 : vector<1x256xi32> to vector<16x256xi32>
    %55 = arith.cmpi eq, %51, %54 : vector<16x256xi32>
    %cst_16 = arith.constant 0.000000e+00 : f32
    %56 = vector.shape_cast %24 : vector<1x256xf32> to vector<1x256xf32>
    %57 = vector.broadcast %56 : vector<1x256xf32> to vector<16x256xf32>
    %58 = vector.broadcast %cst_16 : f32 to vector<16x256xf32>
    %59 = arith.select %55, %57, %58 : vector<16x256xi1>, vector<16x256xf32>
    %60 = vector.shape_cast %47 : vector<1x256xf32> to vector<1x256xf32>
    %61 = vector.broadcast %60 : vector<1x256xf32> to vector<16x256xf32>
    %62 = arith.select %53, %61, %59 : vector<16x256xi1>, vector<16x256xf32>
    %63 = tpu.iota {dimensions = array<i32: 0>} : vector<16x256xi32>
    %64 = vector.broadcast %15 : vector<1x256xi32> to vector<16x256xi32>
    %65 = arith.cmpi eq, %63, %64 : vector<16x256xi32>
    %66 = vector.broadcast %23 : vector<1x256xi32> to vector<16x256xi32>
    %67 = arith.cmpi eq, %63, %66 : vector<16x256xi32>
    %cst_17 = arith.constant 0.000000e+00 : f32
    %68 = vector.shape_cast %44 : vector<1x256xf32> to vector<1x256xf32>
    %69 = vector.broadcast %68 : vector<1x256xf32> to vector<16x256xf32>
    %70 = vector.broadcast %cst_17 : f32 to vector<16x256xf32>
    %71 = arith.select %67, %69, %70 : vector<16x256xi1>, vector<16x256xf32>
    %72 = vector.shape_cast %50 : vector<1x256xf32> to vector<1x256xf32>
    %73 = vector.broadcast %72 : vector<1x256xf32> to vector<16x256xf32>
    %74 = arith.select %65, %73, %71 : vector<16x256xi1>, vector<16x256xf32>
    %c0_18 = arith.constant 0 : index
    %c0_19 = arith.constant 0 : index
    %c0_20 = arith.constant 0 : index
    %75 = vector.load %arg2[%c0_18, %c0_19, %c0_20] : memref<1x64x16xf32, #tpu.memory_space<vmem>>, vector<1x64x16xf32>
    %76 = vector.shape_cast %75 : vector<1x64x16xf32> to vector<64x16xf32>
    %cst_21 = arith.constant dense<0.000000e+00> : vector<64x256xf32>
    %77 = tpu.matmul %76, %62, %cst_21 {dimension_numbers = #tpu.dot_dimension_numbers<[1], [0], [0], [1], [0, 0, 1, 1], [], []>} : vector<64x16xf32>, vector<16x256xf32>, vector<64x256xf32> -> vector<64x256xf32>
    %78 = vector.shape_cast %77 : vector<64x256xf32> to vector<4x16x256xf32>
    %79 = vector.shape_cast %74 : vector<16x256xf32> to vector<1x16x256xf32>
    %80 = vector.broadcast %79 : vector<1x16x256xf32> to vector<4x16x256xf32>
    %81 = arith.mulf %78, %80 : vector<4x16x256xf32>
    %cst_22 = arith.constant dense<0.000000e+00> : vector<4x256xf32>
    %82 = vector.multi_reduction <add>, %81, %cst_22 [1] : vector<4x16x256xf32> to vector<4x256xf32>
    %c0_23 = arith.constant 0 : index
    %c0_24 = arith.constant 0 : index
    %c0_25 = arith.constant 0 : index
    %83 = vector.load %arg5[%c0_23, %c0_24, %c0_25] : memref<1x4x256xf32, #tpu.memory_space<vmem>>, vector<1x4x256xf32>
    %84 = vector.shape_cast %83 : vector<1x4x256xf32> to vector<4x256xf32>
    %85 = vector.shape_cast %82 : vector<4x256xf32> to vector<1x4x256xf32>
    tpu.vector_store %arg5[%c0_23, %c0_24, %c0_25], %85 {strides = array<i32>} : memref<1x4x256xf32, #tpu.memory_space<vmem>>, vector<1x4x256xf32>,
    return
  }
  func.func @transform_0(%arg0: i32, %arg1: i32) -> (i32, i32, i32) {
    %c0_i32 = arith.constant 0 : i32
    %c0_i32_0 = arith.constant 0 : i32
    %c0_i32_1 = arith.constant 0 : i32
    return %arg0, %c0_i32, %c0_i32_0 : i32, i32, i32
  }
  func.func @transform_1(%arg0: i32, %arg1: i32) -> (i32, i32, i32) {
    %c0_i32 = arith.constant 0 : i32
    %c0_i32_0 = arith.constant 0 : i32
    return %arg0, %c0_i32, %arg1 : i32, i32, i32
  }
  func.func @transform_2(%arg0: i32, %arg1: i32) -> (i32, i32, i32) {
    %c0_i32 = arith.constant 0 : i32
    %c0_i32_0 = arith.constant 0 : i32
    return %arg0, %c0_i32, %arg1 : i32, i32, i32
  }
  func.func @transform_3(%arg0: i32, %arg1: i32) -> (i32, i32, i32) {
    %c0_i32 = arith.constant 0 : i32
    %c0_i32_0 = arith.constant 0 : i32
    return %arg0, %c0_i32, %arg1 : i32, i32, i32
  }
}

module attributes {stable_mosaic.version = 11 : i64} {
  func.func @_interp2_kernel(%arg0: i32, %arg1: i32, %arg2: memref<1x64x16xf32, #tpu.memory_space<vmem>>, %arg3: memref<1x1x256xf32, #tpu.memory_space<vmem>>, %arg4: memref<1x1x256xf32, #tpu.memory_space<vmem>>, %arg5: memref<1x4x256xf32, #tpu.memory_space<vmem>>) attributes {dimension_semantics = [#tpu.dimension_semantics<parallel>, #tpu.dimension_semantics<arbitrary>], iteration_bounds = array<i64: 2, 1>, scalar_prefetch = 0 : i64, scratch_operands = 0 : i64, tpu.core_type = #tpu.core_type<tc>, window_params = [{transform_indices = @transform_0, window_bounds = array<i64: 1, 64, 16>}, {transform_indices = @transform_1, window_bounds = array<i64: 1, 1, 256>}, {transform_indices = @transform_2, window_bounds = array<i64: 1, 1, 256>}, {transform_indices = @transform_3, window_bounds = array<i64: 1, 4, 256>}]} {
    %c0 = arith.constant 0 : index
    %c0_0 = arith.constant 0 : index
    %c0_1 = arith.constant 0 : index
    %0 = vector.load %arg3[%c0, %c0_0, %c0_1] : memref<1x1x256xf32, #tpu.memory_space<vmem>>, vector<1x1x256xf32>
    %1 = vector.shape_cast %0 : vector<1x1x256xf32> to vector<1x256xf32>
    %c0_2 = arith.constant 0 : index
    %c0_3 = arith.constant 0 : index
    %c0_4 = arith.constant 0 : index
    %2 = vector.load %arg4[%c0_2, %c0_3, %c0_4] : memref<1x1x256xf32, #tpu.memory_space<vmem>>, vector<1x1x256xf32>
    %3 = vector.shape_cast %2 : vector<1x1x256xf32> to vector<1x256xf32>
    %4 = math.floor %1 : vector<1x256xf32>
    %cst = arith.constant 0.000000e+00 : f32
    %cst_5 = arith.constant 1.500000e+01 : f32
    %5 = vector.broadcast %cst : f32 to vector<1x256xf32>
    %6 = arith.maximumf %5, %4 : vector<1x256xf32>
    %7 = vector.broadcast %cst_5 : f32 to vector<1x256xf32>
    %8 = arith.minimumf %7, %6 : vector<1x256xf32>
    %9 = math.floor %3 : vector<1x256xf32>
    %cst_6 = arith.constant 0.000000e+00 : f32
    %cst_7 = arith.constant 1.500000e+01 : f32
    %10 = vector.broadcast %cst_6 : f32 to vector<1x256xf32>
    %11 = arith.maximumf %10, %9 : vector<1x256xf32>
    %12 = vector.broadcast %cst_7 : f32 to vector<1x256xf32>
    %13 = arith.minimumf %12, %11 : vector<1x256xf32>
    %14 = arith.fptosi %8 : vector<1x256xf32> to vector<1x256xi32>
    %15 = arith.fptosi %13 : vector<1x256xf32> to vector<1x256xi32>
    %c1_i32 = arith.constant 1 : i32
    %16 = vector.broadcast %c1_i32 : i32 to vector<1x256xi32>
    %17 = arith.addi %14, %16 : vector<1x256xi32>
    %c15_i32 = arith.constant 15 : i32
    %18 = vector.broadcast %c15_i32 : i32 to vector<1x256xi32>
    %19 = arith.minsi %17, %18 : vector<1x256xi32>
    %c1_i32_8 = arith.constant 1 : i32
    %20 = vector.broadcast %c1_i32_8 : i32 to vector<1x256xi32>
    %21 = arith.addi %15, %20 : vector<1x256xi32>
    %c15_i32_9 = arith.constant 15 : i32
    %22 = vector.broadcast %c15_i32_9 : i32 to vector<1x256xi32>
    %23 = arith.minsi %21, %22 : vector<1x256xi32>
    %24 = arith.subf %1, %8 : vector<1x256xf32>
    %25 = arith.subf %3, %13 : vector<1x256xf32>
    %cst_10 = arith.constant 1.000000e+00 : f32
    %26 = vector.broadcast %cst_10 : f32 to vector<1x256xf32>
    %27 = arith.subf %26, %24 : vector<1x256xf32>
    %cst_11 = arith.constant 1.000000e+00 : f32
    %28 = vector.broadcast %cst_11 : f32 to vector<1x256xf32>
    %29 = arith.subf %28, %25 : vector<1x256xf32>
    %cst_12 = arith.constant 0.000000e+00 : f32
    %30 = vector.broadcast %cst_12 : f32 to vector<1x256xf32>
    %31 = arith.cmpf oge, %1, %30 : vector<1x256xf32>
    %cst_13 = arith.constant 1.600000e+01 : f32
    %32 = vector.broadcast %cst_13 : f32 to vector<1x256xf32>
    %33 = arith.cmpf olt, %1, %32 : vector<1x256xf32>
    %34 = arith.andi %31, %33 : vector<1x256xi1>
    %cst_14 = arith.constant 0.000000e+00 : f32
    %35 = vector.broadcast %cst_14 : f32 to vector<1x256xf32>
    %36 = arith.cmpf oge, %3, %35 : vector<1x256xf32>
    %37 = arith.andi %34, %36 : vector<1x256xi1>
    %cst_15 = arith.constant 1.600000e+01 : f32
    %38 = vector.broadcast %cst_15 : f32 to vector<1x256xf32>
    %39 = arith.cmpf olt, %3, %38 : vector<1x256xf32>
    %40 = arith.andi %37, %39 : vector<1x256xi1>
    %41 = arith.extui %40 : vector<1x256xi1> to vector<1x256xi32>
    %42 = arith.sitofp %41 : vector<1x256xi32> to vector<1x256xf32>
    %43 = arith.mulf %29, %42 : vector<1x256xf32>
    %44 = arith.mulf %25, %42 : vector<1x256xf32>
    %45 = arith.cmpi eq, %19, %14 : vector<1x256xi32>
    %46 = arith.addf %27, %24 : vector<1x256xf32>
    %47 = arith.select %45, %46, %27 : vector<1x256xi1>, vector<1x256xf32>
    %48 = arith.cmpi eq, %23, %15 : vector<1x256xi32>
    %49 = arith.addf %43, %44 : vector<1x256xf32>
    %50 = arith.select %48, %49, %43 : vector<1x256xi1>, vector<1x256xf32>
    %51 = tpu.iota {dimensions = array<i32: 0>} : vector<16x256xi32>
    %52 = vector.broadcast %14 : vector<1x256xi32> to vector<16x256xi32>
    %53 = arith.cmpi eq, %51, %52 : vector<16x256xi32>
    %54 = vector.broadcast %19 : vector<1x256xi32> to vector<16x256xi32>
    %55 = arith.cmpi eq, %51, %54 : vector<16x256xi32>
    %cst_16 = arith.constant 0.000000e+00 : f32
    %56 = vector.shape_cast %24 : vector<1x256xf32> to vector<1x256xf32>
    %57 = vector.broadcast %56 : vector<1x256xf32> to vector<16x256xf32>
    %58 = vector.broadcast %cst_16 : f32 to vector<16x256xf32>
    %59 = arith.select %55, %57, %58 : vector<16x256xi1>, vector<16x256xf32>
    %60 = vector.shape_cast %47 : vector<1x256xf32> to vector<1x256xf32>
    %61 = vector.broadcast %60 : vector<1x256xf32> to vector<16x256xf32>
    %62 = arith.select %53, %61, %59 : vector<16x256xi1>, vector<16x256xf32>
    %63 = tpu.iota {dimensions = array<i32: 0>} : vector<16x256xi32>
    %64 = vector.broadcast %15 : vector<1x256xi32> to vector<16x256xi32>
    %65 = arith.cmpi eq, %63, %64 : vector<16x256xi32>
    %66 = vector.broadcast %23 : vector<1x256xi32> to vector<16x256xi32>
    %67 = arith.cmpi eq, %63, %66 : vector<16x256xi32>
    %cst_17 = arith.constant 0.000000e+00 : f32
    %68 = vector.shape_cast %44 : vector<1x256xf32> to vector<1x256xf32>
    %69 = vector.broadcast %68 : vector<1x256xf32> to vector<16x256xf32>
    %70 = vector.broadcast %cst_17 : f32 to vector<16x256xf32>
    %71 = arith.select %67, %69, %70 : vector<16x256xi1>, vector<16x256xf32>
    %72 = vector.shape_cast %50 : vector<1x256xf32> to vector<1x256xf32>
    %73 = vector.broadcast %72 : vector<1x256xf32> to vector<16x256xf32>
    %74 = arith.select %65, %73, %71 : vector<16x256xi1>, vector<16x256xf32>
    %c0_18 = arith.constant 0 : index
    %c0_19 = arith.constant 0 : index
    %c0_20 = arith.constant 0 : index
    %75 = vector.load %arg2[%c0_18, %c0_19, %c0_20] : memref<1x64x16xf32, #tpu.memory_space<vmem>>, vector<1x64x16xf32>
    %76 = vector.shape_cast %75 : vector<1x64x16xf32> to vector<64x16xf32>
    %cst_21 = arith.constant dense<0.000000e+00> : vector<64x256xf32>
    %77 = tpu.matmul %76, %62, %cst_21 {dimension_numbers = #tpu.dot_dimension_numbers<[1], [0], [0], [1], [0, 0, 1, 1], [], []>} : vector<64x16xf32>, vector<16x256xf32>, vector<64x256xf32> -> vector<64x256xf32>
    %78 = vector.shape_cast %77 : vector<64x256xf32> to vector<4x16x256xf32>
    %79 = vector.shape_cast %74 : vector<16x256xf32> to vector<1x16x256xf32>
    %80 = vector.broadcast %79 : vector<1x16x256xf32> to vector<4x16x256xf32>
    %81 = arith.mulf %78, %80 : vector<4x16x256xf32>
    %cst_22 = arith.constant dense<0.000000e+00> : vector<4x256xf32>
    %82 = vector.multi_reduction <add>, %81, %cst_22 [1] : vector<4x16x256xf32> to vector<4x256xf32>
    %c0_23 = arith.constant 0 : index
    %c0_24 = arith.constant 0 : index
    %c0_25 = arith.constant 0 : index
    %83 = vector.load %arg5[%c0_23, %c0_24, %c0_25] : memref<1x4x256xf32, #tpu.memory_space<vmem>>, vector<1x4x256xf32>
    %84 = vector.shape_cast %83 : vector<1x4x256xf32> to vector<4x256xf32>
    %85 = vector.shape_cast %82 : vector<4x256xf32> to vector<1x4x256xf32>
    tpu.vector_store %arg5[%c0_23, %c0_24, %c0_25], %85 {strides = array<i32>} : memref<1x4x256xf32, #tpu.memory_space<vmem>>, vector<1x4x256xf32>,
    return
  }
  func.func @transform_0(%arg0: i32, %arg1: i32) -> (i32, i32, i32) {
    %c0_i32 = arith.constant 0 : i32
    %c0_i32_0 = arith.constant 0 : i32
    %c0_i32_1 = arith.constant 0 : i32
    return %arg0, %c0_i32, %c0_i32_0 : i32, i32, i32
  }
  func.func @transform_1(%arg0: i32, %arg1: i32) -> (i32, i32, i32) {
    %c0_i32 = arith.constant 0 : i32
    %c0_i32_0 = arith.constant 0 : i32
    return %arg0, %c0_i32, %arg1 : i32, i32, i32
  }
  func.func @transform_2(%arg0: i32, %arg1: i32) -> (i32, i32, i32) {
    %c0_i32 = arith.constant 0 : i32
    %c0_i32_0 = arith.constant 0 : i32
    return %arg0, %c0_i32, %arg1 : i32, i32, i32
  }
  func.func @transform_3(%arg0: i32, %arg1: i32) -> (i32, i32, i32) {
    %c0_i32 = arith.constant 0 : i32
    %c0_i32_0 = arith.constant 0 : i32
    return %arg0, %c0_i32, %arg1 : i32, i32, i32
  }
}

</mosaic_0001>

<llo_original>
// kernel: tpu_custom_call.1
$region0: #{tpu_custom_call.1}
  #allocation0 [shape = 'u32[]', space=smem, size = 0x4, offset = 0x4, fixed_abs, tag = 'smem constant byte address 0x4 - core index']
  #allocation1 [shape = 'u32[144,128]{1,0:T(1,128)}', space=vmem, size = 0x12000, scoped, tag = 'internal scratch']
  %s0 = inlined_call_operand.vmem [shape: f32[2,64,16], index: 0, kind: input, shape index: {}]
  %s1 = inlined_call_operand.vmem [shape: f32[2,1,256], index: 1, kind: input, shape index: {}]
  %s2 = inlined_call_operand.vmem [shape: f32[2,1,256], index: 2, kind: input, shape index: {}]
  %s3 = inlined_call_operand.hbm [shape: f32[2,4,256], index: 3, kind: output, shape index: {}]
  %s4 = sld [smem:[#allocation0]]
  $region45: #{tpu_custom_call.1} parent=0
    _
  %s6 = ssub.s32 1, %s4
  %s7 = scalar_select 0, %s6, %s4
  $region1: #{tpu_custom_call.1} parent=0
    #allocation2 [shape = 'u8[8192]{0}', space=vmem, size = 0x2000, scoped, tag = 'output window, operand 0']
    #allocation3 [shape = 's32[2]{0}', space=sflag, size = 0x8, scoped, tag = 'scoped memory for tpu_custom_call.1']
    %8 = vsyncpa [#allocation3], 0
    %s9 = scalar_lea.sflag [#allocation3], 1
    %10 = vsyncpa %s9, 0
    loop: start=0, step=1, limit=4
    $region2: #{tpu_custom_call.1} parent=1 // loop_pre_header
      _
    $region3: #{tpu_custom_call.1} parent=1 // loop_header
      %s12 = sphi 0, %s16
      %p13 = scmp.ge.s32.totalorder %s12, 4
      %s19 = sphi 0, %s31
      %s20 = sphi 0, %s27
      %s21 = sphi 0, %s19
      %s22 = sphi 0, %s20
      %s23 = sphi 0, %s21
      %s24 = sphi 0, %s22
      %s34 = sphi 0, %s36
      %s37 = sphi 0, %s34
      %s38 = sphi 0, %s37
      %s54 = sphi 0, %s38
      %s62 = sphi 0, %s64
      %s65 = sphi 0, %s62
      %s66 = sphi 0, %s65
      %s82 = sphi 0, %s66
      %s90 = sphi 0, %s92
      %s93 = sphi 0, %s90
      %s94 = sphi 0, %s93
      %s110 = sphi 0, %s94
      %s118 = sphi 0, %s120
      %s121 = sphi 0, %s118
      %s122 = sphi 0, %s121
      %s138 = sphi 0, %s122
    $region4: #{tpu_custom_call.1} parent=1 // loop_header_branch
      %15 = sbr.rel (%p13) target = $region8
    $region5: #{tpu_custom_call.1} parent=1 // loop_body
      %s17 = ssub.s32 %s12, 1
      %s18 = ssub.s32 %s12, 2
      %s25 = sadd.s32 1, %s20
      %p26 = scmp.ge.s32.totalorder %s25, 1
      %s27 = scalar_select %p26, 0, %s25
      %s28 = sadd.s32 1, %s19
      %s29 = scalar_select %p26, %s28, %s19
      %p30 = scmp.ge.s32.totalorder %s29, 2
      %s31 = scalar_select %p30, 0, %s29
      %s32 = ssub.s32 %s19, %s31
      %p33 = scmp.eq.s32.totalorder %s32, 0
      %s35 = sadd.s32 %s34, 1
      %s36 = scalar_select %p33, %s34, %s35
      %p39 = pneg %p33
      %p40 = scmp.eq.s32.totalorder %s12, 1
      %p41 = por %p39, %p40
      %p42 = scmp.ne.s32.totalorder %s34, %s37
      %p43 = scmp.eq.s32.totalorder %s12, 0
      %p44 = por %p42, %p43
      %p45 = scmp.ne.s32.totalorder %s34, %s37
      %p46 = scmp.eq.s32.totalorder %s17, 1
      %p47 = por %p45, %p46
      %p48 = scmp.ne.s32.totalorder %s37, %s38
      %p49 = scmp.eq.s32.totalorder %s17, 0
      %p50 = por %p48, %p49
      %p51 = scmp.ne.s32.totalorder %s37, %s38
      %p52 = scmp.eq.s32.totalorder %s18, 1
      %p53 = por %p51, %p52
      %p55 = scmp.ne.s32.totalorder %s38, %s54
      %p56 = scmp.eq.s32.totalorder %s18, 0
      %p57 = por %p55, %p56
      %s58 = ssub.s32 %s19, %s31
      %s59 = ssub.s32 %s20, %s27
      %s60 = sor.u32 %s58, %s59
      %p61 = scmp.eq.s32.totalorder %s60, 0
      %s63 = sadd.s32 %s62, 1
      %s64 = scalar_select %p61, %s62, %s63
      %p67 = pneg %p61
      %p68 = scmp.eq.s32.totalorder %s12, 1
      %p69 = por %p67, %p68
      %p70 = scmp.ne.s32.totalorder %s62, %s65
      %p71 = scmp.eq.s32.totalorder %s12, 0
      %p72 = por %p70, %p71
      %p73 = scmp.ne.s32.totalorder %s62, %s65
      %p74 = scmp.eq.s32.totalorder %s17, 1
      %p75 = por %p73, %p74
      %p76 = scmp.ne.s32.totalorder %s65, %s66
      %p77 = scmp.eq.s32.totalorder %s17, 0
      %p78 = por %p76, %p77
      %p79 = scmp.ne.s32.totalorder %s65, %s66
      %p80 = scmp.eq.s32.totalorder %s18, 1
      %p81 = por %p79, %p80
      %p83 = scmp.ne.s32.totalorder %s66, %s82
      %p84 = scmp.eq.s32.totalorder %s18, 0
      %p85 = por %p83, %p84
      %s86 = ssub.s32 %s19, %s31
      %s87 = ssub.s32 %s20, %s27
      %s88 = sor.u32 %s86, %s87
      %p89 = scmp.eq.s32.totalorder %s88, 0
      %s91 = sadd.s32 %s90, 1
      %s92 = scalar_select %p89, %s90, %s91
      %p95 = pneg %p89
      %p96 = scmp.eq.s32.totalorder %s12, 1
      %p97 = por %p95, %p96
      %p98 = scmp.ne.s32.totalorder %s90, %s93
      %p99 = scmp.eq.s32.totalorder %s12, 0
      %p100 = por %p98, %p99
      %p101 = scmp.ne.s32.totalorder %s90, %s93
      %p102 = scmp.eq.s32.totalorder %s17, 1
      %p103 = por %p101, %p102
      %p104 = scmp.ne.s32.totalorder %s93, %s94
      %p105 = scmp.eq.s32.totalorder %s17, 0
      %p106 = por %p104, %p105
      %p107 = scmp.ne.s32.totalorder %s93, %s94
      %p108 = scmp.eq.s32.totalorder %s18, 1
      %p109 = por %p107, %p108
      %p111 = scmp.ne.s32.totalorder %s94, %s110
      %p112 = scmp.eq.s32.totalorder %s18, 0
      %p113 = por %p111, %p112
      %s114 = ssub.s32 %s19, %s31
      %s115 = ssub.s32 %s20, %s27
      %s116 = sor.u32 %s114, %s115
      %p117 = scmp.eq.s32.totalorder %s116, 0
      %s119 = sadd.s32 %s118, 1
      %s120 = scalar_select %p117, %s118, %s119
      %p123 = pneg %p117
      %p124 = scmp.eq.s32.totalorder %s12, 1
      %p125 = por %p123, %p124
      %p126 = scmp.ne.s32.totalorder %s118, %s121
      %p127 = scmp.eq.s32.totalorder %s12, 0
      %p128 = por %p126, %p127
      %p129 = scmp.ne.s32.totalorder %s118, %s121
      %p130 = scmp.eq.s32.totalorder %s17, 1
      %p131 = por %p129, %p130
      %p132 = scmp.ne.s32.totalorder %s121, %s122
      %p133 = scmp.eq.s32.totalorder %s17, 0
      %p134 = por %p132, %p133
      %p135 = scmp.ne.s32.totalorder %s121, %s122
      %p136 = scmp.eq.s32.totalorder %s18, 1
      %p137 = por %p135, %p136
      %p139 = scmp.ne.s32.totalorder %s122, %s138
      %p140 = scmp.eq.s32.totalorder %s18, 0
      %p141 = por %p139, %p140
      %p142 = scmp.le.s32.totalorder 1, %s12
      %p143 = scmp.lt.s32.totalorder %s12, 3
      %p144 = pnand %p142, %p143
      %p145 = pneg %p144
      // Predicated region
      $region9: #{tpu_custom_call.1} parent=5 // pred_check
        _
      $region10: #{tpu_custom_call.1} parent=5 // pred_check_branch
        %147 = sbr.rel (%p144) target = $region12
      $region11: #{tpu_custom_call.1} parent=5 // pred_region
        %s148 = ssub.s32 %s12, 1
        // Predicated region
        $region13: #{tpu_custom_call.1} parent=11 // pred_check
          %p149 = pneg %p50
        $region14: #{tpu_custom_call.1} parent=11 // pred_check_branch
          %151 = sbr.rel (%p149) target = $region16
        $region15: #{tpu_custom_call.1} parent=11 // pred_region
          %p152 = scmp.lt.s32.totalorder %s21, 1
          %s153 = scalar_select %p152, %s21, 1
          %s154 = smul.addr %s153, 8
          %s155 = smul.addr %s154, 8
          %s156 = scalar_lea.vmem %s0, %s155
        $region16: #{tpu_custom_call.1} parent=11 // pred_fallthru
          _
      $region12: #{tpu_custom_call.1} parent=5 // pred_fallthru
        _
      %p157 = scmp.lt.s32.totalorder %s12, 2
      // Predicated region
      $region17: #{tpu_custom_call.1} parent=5 // pred_check
        %p158 = pneg %p157
      $region18: #{tpu_custom_call.1} parent=5 // pred_check_branch
        %160 = sbr.rel (%p158) target = $region20
      $region19: #{tpu_custom_call.1} parent=5 // pred_region
        // Predicated region
        $region21: #{tpu_custom_call.1} parent=19 // pred_check
          %p161 = pneg %p72
        $region22: #{tpu_custom_call.1} parent=19 // pred_check_branch
          %163 = sbr.rel (%p161) target = $region24
        $region23: #{tpu_custom_call.1} parent=19 // pred_region
          %s164 = smul.u32 2, %s20
          %p165 = scmp.lt.s32.totalorder %s19, 1
          %s166 = scalar_select %p165, %s19, 1
          %p167 = scmp.lt.s32.totalorder %s164, 1
          %s168 = scalar_select %p167, %s164, 1
          %s169 = smul.addr %s166, 2
          %s170 = sadd.s32 %s168, %s169
          %s171 = scalar_lea.vmem %s1, %s170
          %s172 = smul.u32 2, %s20
        $region24: #{tpu_custom_call.1} parent=19 // pred_fallthru
          _
        // Predicated region
        $region25: #{tpu_custom_call.1} parent=19 // pred_check
          %p173 = pneg %p100
        $region26: #{tpu_custom_call.1} parent=19 // pred_check_branch
          %175 = sbr.rel (%p173) target = $region28
        $region27: #{tpu_custom_call.1} parent=19 // pred_region
          %s176 = smul.u32 2, %s20
          %p177 = scmp.lt.s32.totalorder %s19, 1
          %s178 = scalar_select %p177, %s19, 1
          %p179 = scmp.lt.s32.totalorder %s176, 1
          %s180 = scalar_select %p179, %s176, 1
          %s181 = smul.addr %s178, 2
          %s182 = sadd.s32 %s180, %s181
          %s183 = scalar_lea.vmem %s2, %s182
          %s184 = smul.u32 2, %s20
        $region28: #{tpu_custom_call.1} parent=19 // pred_fallthru
          _
      $region20: #{tpu_custom_call.1} parent=5 // pred_fallthru
        _
      %p185 = scmp.le.s32.totalorder 1, %s12
      %p186 = scmp.lt.s32.totalorder %s12, 3
      %p187 = pnand %p185, %p186
      %p188 = pneg %p187
      // Predicated region
      $region29: #{tpu_custom_call.1} parent=5 // pred_check
        _
      $region30: #{tpu_custom_call.1} parent=5 // pred_check_branch
        %190 = sbr.rel (%p187) target = $region32
      $region31: #{tpu_custom_call.1} parent=5 // pred_region
        %s191 = ssub.s32 %s12, 1
        %p192 = scmp.lt.s32.totalorder %s21, 1
        %s193 = scalar_select %p192, %s21, 1
        %s194 = smul.addr %s193, 8
        %s195 = smul.addr %s194, 8
        %s196 = scalar_lea.vmem %s0, %s195
        %p197 = pneg %p50
        %p198 = pneg %p47
        %s199 = smul.u32 2, %s22
        %p200 = scmp.lt.s32.totalorder %s21, 1
        %s201 = scalar_select %p200, %s21, 1
        %p202 = scmp.lt.s32.totalorder %s199, 1
        %s203 = scalar_select %p202, %s199, 1
        %s204 = smul.addr %s201, 2
        %s205 = sadd.s32 %s203, %s204
        %s206 = scalar_lea.vmem %s1, %s205
        %p207 = pneg %p78
        %p208 = pneg %p75
        %s209 = smul.u32 2, %s22
        %p210 = scmp.lt.s32.totalorder %s21, 1
        %s211 = scalar_select %p210, %s21, 1
        %p212 = scmp.lt.s32.totalorder %s209, 1
        %s213 = scalar_select %p212, %s209, 1
        %s214 = smul.addr %s211, 2
        %s215 = sadd.s32 %s213, %s214
        %s216 = scalar_lea.vmem %s2, %s215
        %p217 = pneg %p106
        %p218 = pneg %p103
        %p219 = pneg %p134
        %p220 = pneg %p131
        %s221 = sand.u32 %s121, 1
        %s222 = scalar_lea.sflag [#allocation3], %s221
        %s223 = sand.u32 %s121, 1
        %s224 = smul.addr %s223, 8
        %s225 = scalar_lea.vmem [#allocation2], %s224
        %p226 = scmp.lt.s32.totalorder %s21, 1
        %s227 = scalar_select %p226, %s21, 1
        %s228 = smul.addr %s227, 8
        %s229 = smul.addr %s228, 8
        %s230 = scalar_lea.vmem %s0, %s229
        %s231 = smul.u32 2, %s22
        %p232 = scmp.lt.s32.totalorder %s21, 1
        %s233 = scalar_select %p232, %s21, 1
        %p234 = scmp.lt.s32.totalorder %s231, 1
        %s235 = scalar_select %p234, %s231, 1
        %s236 = smul.addr %s233, 2
        %s237 = sadd.s32 %s235, %s236
        %s238 = scalar_lea.vmem %s1, %s237
        %s239 = smul.u32 2, %s22
        %s240 = smul.u32 2, %s22
        %p241 = scmp.lt.s32.totalorder %s21, 1
        %s242 = scalar_select %p241, %s21, 1
        %p243 = scmp.lt.s32.totalorder %s240, 1
        %s244 = scalar_select %p243, %s240, 1
        %s245 = smul.addr %s242, 2
        %s246 = sadd.s32 %s244, %s245
        %s247 = scalar_lea.vmem %s2, %s246
        %s248 = smul.u32 2, %s22
        %s249 = smul.u32 2, %s22
        %v250 = vld [vmem:[%s238] sm:$0x3]
        %v251 = vld [vmem:[%s247] sm:$0x3]
        %v252 = vfloor.f32 %v250
        %v253 = vmax.f32 %v252, 0.0
        %v254 = vmin.f32 %v253, 15.0
        %v255 = vfloor.f32 %v251
        %v256 = vmax.f32 %v255, 0.0
        %v257 = vmin.f32 %v256, 15.0
        %v258 = vcvt.f32.s32.to.zero.pseudo %v254
        %v259 = vcvt.f32.s32.to.zero.pseudo %v257
        %v260 = vadd.s32 %v258, 1
        %vm261 = vcmp.lt.s32.totalorder %v260, 15
        %v262 = vsel %vm261, %v260, 15
        %v263 = vadd.s32 %v259, 1
        %vm264 = vcmp.lt.s32.totalorder %v263, 15
        %v265 = vsel %vm264, %v263, 15
        %v266 = vsub.f32 %v250, %v254
        %v267 = vsub.f32 %v251, %v257
        %v268 = vsub.f32 1.0, %v266
        %v269 = vsub.f32 1.0, %v267
        %vm270 = vcmp.ge.f32.partialorder %v250, 0.0
        %vm271 = vcmp.lt.f32.partialorder %v250, 16.0
        %vm272 = vmand %vm270, %vm271
        %vm273 = vcmp.ge.f32.partialorder %v251, 0.0
        %vm274 = vmand %vm272, %vm273
        %vm275 = vcmp.lt.f32.partialorder %v251, 16.0
        %vm276 = vmand %vm274, %vm275
        %v277 = vsel %vm276, 1, 0
        %v278 = vcvt.s32.f32 %v277
        %v279 = vmul.f32 %v269, %v278
        %v280 = vmul.f32 %v267, %v278
        %vm281 = vcmp.eq.s32.totalorder %v262, %v258
        %v282 = vadd.f32 %v268, %v266
        %v283 = vsel %vm281, %v282, %v268
        %vm284 = vcmp.eq.s32.totalorder %v265, %v259
        %v285 = vadd.f32 %v279, %v280
        %v286 = vsel %vm284, %v285, %v279
        %v287 = vlaneseq
        %v288 = vshrl.u32 %v287, 7
        %v289 = vadd.s32 %v288, 8
        %v290 = vlaneseq
        %v291 = vshrl.u32 %v290, 7
        %v292 = vsub.s32 0, %v291
        %v293 = vrot.slane %v258, %v292
        %v294 = vlaneseq
        %v295 = vshrl.u32 %v294, 7
        %v296 = vsub.s32 1, %v295
        %v297 = vrot.slane %v258, %v296
        %vm298 = vcmp.eq.s32.totalorder %v288, %v293
        %vm299 = vcmp.eq.s32.totalorder %v288, %v297
        %vm300 = vcmp.eq.s32.totalorder %v289, %v293
        %vm301 = vcmp.eq.s32.totalorder %v289, %v297
        %v302 = vlaneseq
        %v303 = vshrl.u32 %v302, 7
        %v304 = vsub.s32 0, %v303
        %v305 = vrot.slane %v262, %v304
        %v306 = vlaneseq
        %v307 = vshrl.u32 %v306, 7
        %v308 = vsub.s32 1, %v307
        %v309 = vrot.slane %v262, %v308
        %vm310 = vcmp.eq.s32.totalorder %v288, %v305
        %vm311 = vcmp.eq.s32.totalorder %v288, %v309
        %vm312 = vcmp.eq.s32.totalorder %v289, %v305
        %vm313 = vcmp.eq.s32.totalorder %v289, %v309
        %v315 = vlaneseq
        %v316 = vshrl.u32 %v315, 7
        %v317 = vsub.s32 0, %v316
        %v318 = vrot.slane %v266, %v317
        %v319 = vlaneseq
        %v320 = vshrl.u32 %v319, 7
        %v321 = vsub.s32 1, %v320
        %v322 = vrot.slane %v266, %v321
        %v325 = vsel %vm310, %v318, 0.0
        %v326 = vsel %vm311, %v322, 0.0
        %v327 = vsel %vm312, %v318, 0.0
        %v328 = vsel %vm313, %v322, 0.0
        %v330 = vlaneseq
        %v331 = vshrl.u32 %v330, 7
        %v332 = vsub.s32 0, %v331
        %v333 = vrot.slane %v283, %v332
        %v334 = vlaneseq
        %v335 = vshrl.u32 %v334, 7
        %v336 = vsub.s32 1, %v335
        %v337 = vrot.slane %v283, %v336
        %v340 = vsel %vm298, %v333, %v325
        %v341 = vsel %vm299, %v337, %v326
        %v342 = vsel %vm300, %v333, %v327
        %v343 = vsel %vm301, %v337, %v328
        %v344 = vlaneseq
        %v345 = vshrl.u32 %v344, 7
        %v346 = vsub.s32 0, %v345
        %v347 = vrot.slane %v259, %v346
        %v348 = vlaneseq
        %v349 = vshrl.u32 %v348, 7
        %v350 = vsub.s32 1, %v349
        %v351 = vrot.slane %v259, %v350
        %vm352 = vcmp.eq.s32.totalorder %v288, %v347
        %vm353 = vcmp.eq.s32.totalorder %v288, %v351
        %vm354 = vcmp.eq.s32.totalorder %v289, %v347
        %vm355 = vcmp.eq.s32.totalorder %v289, %v351
        %v356 = vlaneseq
        %v357 = vshrl.u32 %v356, 7
        %v358 = vsub.s32 0, %v357
        %v359 = vrot.slane %v265, %v358
        %v360 = vlaneseq
        %v361 = vshrl.u32 %v360, 7
        %v362 = vsub.s32 1, %v361
        %v363 = vrot.slane %v265, %v362
        %vm364 = vcmp.eq.s32.totalorder %v288, %v359
        %vm365 = vcmp.eq.s32.totalorder %v288, %v363
        %vm366 = vcmp.eq.s32.totalorder %v289, %v359
        %vm367 = vcmp.eq.s32.totalorder %v289, %v363
        %v369 = vlaneseq
        %v370 = vshrl.u32 %v369, 7
        %v371 = vsub.s32 0, %v370
        %v372 = vrot.slane %v280, %v371
        %v373 = vlaneseq
        %v374 = vshrl.u32 %v373, 7
        %v375 = vsub.s32 1, %v374
        %v376 = vrot.slane %v280, %v375
        %v379 = vsel %vm364, %v372, 0.0
        %v380 = vsel %vm365, %v376, 0.0
        %v381 = vsel %vm366, %v372, 0.0
        %v382 = vsel %vm367, %v376, 0.0
        %v384 = vlaneseq
        %v385 = vshrl.u32 %v384, 7
        %v386 = vsub.s32 0, %v385
        %v387 = vrot.slane %v286, %v386
        %v388 = vlaneseq
        %v389 = vshrl.u32 %v388, 7
        %v390 = vsub.s32 1, %v389
        %v391 = vrot.slane %v286, %v390
        %v394 = vsel %vm352, %v387, %v379
        %v395 = vsel %vm353, %v391, %v380
        %v396 = vsel %vm354, %v387, %v381
        %v397 = vsel %vm355, %v391, %v382
        %v398 = vld [vmem:[%s230] sm:$0xff]
        %v399 = vld [vmem:[%s230 + $0x8] sm:$0xff]
        %v400 = vld [vmem:[%s230 + $0x10] sm:$0xff]
        %v401 = vld [vmem:[%s230 + $0x18] sm:$0xff]
        %v402 = vld [vmem:[%s230 + $0x20] sm:$0xff]
        %v403 = vld [vmem:[%s230 + $0x28] sm:$0xff]
        %v404 = vld [vmem:[%s230 + $0x30] sm:$0xff]
        %v405 = vld [vmem:[%s230 + $0x38] sm:$0xff]
        %vm406 = vcmask 130048
        %v408 = vsel %vm406, %v398, 0
        %v411 = vsel %vm406, %v399, 0
        %v414 = vsel %vm406, %v400, 0
        %v417 = vsel %vm406, %v401, 0
        %v420 = vsel %vm406, %v402, 0
        %v423 = vsel %vm406, %v403, 0
        %v426 = vsel %vm406, %v404, 0
        %v429 = vsel %vm406, %v405, 0
        %431 = vmatprep.subr.mxu0 %v341
        %432 = vmatpush1.msra.mxu0 %v340
        %433 = vmatprep.subr.mxu0 %v343
        %434 = vmatpush1.msra.mxu0 %v342
        %435 = vmatprep.subr.mxu0 0.0
        %436 = vmatpush1.msra.mxu0 0.0
        %437 = vmatprep.subr.mxu0 0.0
        %438 = vmatpush1.msra.mxu0 0.0
        %439 = vmatprep.subr.mxu0 0.0
        %440 = vmatpush1.msra.mxu0 0.0
        %441 = vmatprep.subr.mxu0 0.0
        %442 = vmatpush1.msra.mxu0 0.0
        %443 = vmatprep.subr.mxu0 0.0
        %444 = vmatpush1.msra.mxu0 0.0
        %445 = vmatprep.subr.mxu0 0.0
        %446 = vmatpush1.msra.mxu0 0.0
        %447 = vmatprep.subr.mxu0 0.0
        %448 = vmatpush1.msra.mxu0 0.0
        %449 = vmatprep.subr.mxu0 0.0
        %450 = vmatpush1.msra.mxu0 0.0
        %451 = vmatprep.subr.mxu0 0.0
        %452 = vmatpush1.msra.mxu0 0.0
        %453 = vmatprep.subr.mxu0 0.0
        %454 = vmatpush1.msra.mxu0 0.0
        %455 = vmatprep.subr.mxu0 0.0
        %456 = vmatpush1.msra.mxu0 0.0
        %457 = vmatprep.subr.mxu0 0.0
        %458 = vmatpush1.msra.mxu0 0.0
        %459 = vmatprep.subr.mxu0 0.0
        %460 = vmatpush1.msra.mxu0 0.0
        %461 = vmatprep.subr.mxu0 0.0
        %462 = vmatpush1.msra.mxu0 0.0
        %463 = vmatprep.subr.mxu0 0.0
        %464 = vmatpush1.msra.mxu0 0.0
        %465 = vmatprep.subr.mxu0 0.0
        %466 = vmatpush1.msra.mxu0 0.0
        %467 = vmatprep.subr.mxu0 0.0
        %468 = vmatpush1.msra.mxu0 0.0
        %469 = vmatprep.subr.mxu0 0.0
        %470 = vmatpush1.msra.mxu0 0.0
        %471 = vmatprep.subr.mxu0 0.0
        %472 = vmatpush1.msra.mxu0 0.0
        %473 = vmatprep.subr.mxu0 0.0
        %474 = vmatpush1.msra.mxu0 0.0
        %475 = vmatprep.subr.mxu0 0.0
        %476 = vmatpush1.msra.mxu0 0.0
        %477 = vmatprep.subr.mxu0 0.0
        %478 = vmatpush1.msra.mxu0 0.0
        %479 = vmatprep.subr.mxu0 0.0
        %480 = vmatpush1.msra.mxu0 0.0
        %481 = vmatprep.subr.mxu0 0.0
        %482 = vmatpush1.msra.mxu0 0.0
        %483 = vmatprep.subr.mxu0 0.0
        %484 = vmatpush1.msra.mxu0 0.0
        %485 = vmatprep.subr.mxu0 0.0
        %486 = vmatpush1.msra.mxu0 0.0
        %487 = vmatprep.subr.mxu0 0.0
        %488 = vmatpush1.msra.mxu0 0.0
        %489 = vmatprep.subr.mxu0 0.0
        %490 = vmatpush1.msra.mxu0 0.0
        %491 = vmatprep.subr.mxu0 0.0
        %492 = vmatpush1.msra.mxu0 0.0
        %493 = vmatprep.subr.mxu0 0.0
        %494 = vmatpush1.msra.mxu0 0.0
        %495 = vmatprep.mubr.f32.mxu0 0.0
        %496 = vmatmul.mubr.f32.gmra.mrb[0].mxu0 %v408
        %v497 = vpop.f32.mrb[0].mxu0
        %v498 = vadd.f32 0.0, %v497
        %v499 = vpop.f32.mrb[0].mxu0
        %v500 = vadd.f32 0.0, %v499
        %501 = vmatprep.mubr.f32.mxu0 0.0
        %502 = vmatmul.mubr.f32.gmra.mrb[0].mxu0 %v411
        %v503 = vpop.f32.mrb[0].mxu0
        %v504 = vadd.f32 0.0, %v503
        %v505 = vpop.f32.mrb[0].mxu0
        %v506 = vadd.f32 0.0, %v505
        %507 = vmatprep.mubr.f32.mxu0 0.0
        %508 = vmatmul.mubr.f32.gmra.mrb[0].mxu0 %v414
        %v509 = vpop.f32.mrb[0].mxu0
        %v510 = vadd.f32 0.0, %v509
        %v511 = vpop.f32.mrb[0].mxu0
        %v512 = vadd.f32 0.0, %v511
        %513 = vmatprep.mubr.f32.mxu0 0.0
        %514 = vmatmul.mubr.f32.gmra.mrb[0].mxu0 %v417
        %v515 = vpop.f32.mrb[0].mxu0
        %v516 = vadd.f32 0.0, %v515
        %v517 = vpop.f32.mrb[0].mxu0
        %v518 = vadd.f32 0.0, %v517
        %519 = vmatprep.mubr.f32.mxu0 0.0
        %520 = vmatmul.mubr.f32.gmra.mrb[0].mxu0 %v420
        %v521 = vpop.f32.mrb[0].mxu0
        %v522 = vadd.f32 0.0, %v521
        %v523 = vpop.f32.mrb[0].mxu0
        %v524 = vadd.f32 0.0, %v523
        %525 = vmatprep.mubr.f32.mxu0 0.0
        %526 = vmatmul.mubr.f32.gmra.mrb[0].mxu0 %v423
        %v527 = vpop.f32.mrb[0].mxu0
        %v528 = vadd.f32 0.0, %v527
        %v529 = vpop.f32.mrb[0].mxu0
        %v530 = vadd.f32 0.0, %v529
        %531 = vmatprep.mubr.f32.mxu0 0.0
        %532 = vmatmul.mubr.f32.gmra.mrb[0].mxu0 %v426
        %v533 = vpop.f32.mrb[0].mxu0
        %v534 = vadd.f32 0.0, %v533
        %v535 = vpop.f32.mrb[0].mxu0
        %v536 = vadd.f32 0.0, %v535
        %537 = vmatprep.mubr.f32.mxu0 0.0
        %538 = vmatmul.mubr.f32.gmra.mrb[0].mxu0 %v429
        %v539 = vpop.f32.mrb[0].mxu0
        %v540 = vadd.f32 0.0, %v539
        %v541 = vpop.f32.mrb[0].mxu0
        %v542 = vadd.f32 0.0, %v541
        %543 = vdwg.mxu0
        %v544 = vmul.f32 %v498, %v394
        %v545 = vmul.f32 %v500, %v395
        %v546 = vmul.f32 %v504, %v396
        %v547 = vmul.f32 %v506, %v397
        %v548 = vmul.f32 %v510, %v394
        %v549 = vmul.f32 %v512, %v395
        %v550 = vmul.f32 %v516, %v396
        %v551 = vmul.f32 %v518, %v397
        %v552 = vmul.f32 %v522, %v394
        %v553 = vmul.f32 %v524, %v395
        %v554 = vmul.f32 %v528, %v396
        %v555 = vmul.f32 %v530, %v397
        %v556 = vmul.f32 %v534, %v394
        %v557 = vmul.f32 %v536, %v395
        %v558 = vmul.f32 %v540, %v396
        %v559 = vmul.f32 %v542, %v397
        %v560 = vadd.f32 %v544, %v546
        %v561 = vrot.slane %v560, 4
        %v562 = vadd.f32 %v560, %v561
        %v563 = vrot.slane %v562, 2
        %v564 = vadd.f32 %v562, %v563
        %v565 = vrot.slane %v564, 1
        %v566 = vadd.f32 %v564, %v565
        %v567 = vadd.f32 %v545, %v547
        %v568 = vrot.slane %v567, 4
        %v569 = vadd.f32 %v567, %v568
        %v570 = vrot.slane %v569, 2
        %v571 = vadd.f32 %v569, %v570
        %v572 = vrot.slane %v571, 1
        %v573 = vadd.f32 %v571, %v572
        %v574 = vadd.f32 %v548, %v550
        %v575 = vrot.slane %v574, 4
        %v576 = vadd.f32 %v574, %v575
        %v577 = vrot.slane %v576, 2
        %v578 = vadd.f32 %v576, %v577
        %v579 = vrot.slane %v578, 1
        %v580 = vadd.f32 %v578, %v579
        %v581 = vadd.f32 %v549, %v551
        %v582 = vrot.slane %v581, 4
        %v583 = vadd.f32 %v581, %v582
        %v584 = vrot.slane %v583, 2
        %v585 = vadd.f32 %v583, %v584
        %v586 = vrot.slane %v585, 1
        %v587 = vadd.f32 %v585, %v586
        %v588 = vadd.f32 %v552, %v554
        %v589 = vrot.slane %v588, 4
        %v590 = vadd.f32 %v588, %v589
        %v591 = vrot.slane %v590, 2
        %v592 = vadd.f32 %v590, %v591
        %v593 = vrot.slane %v592, 1
        %v594 = vadd.f32 %v592, %v593
        %v595 = vadd.f32 %v553, %v555
        %v596 = vrot.slane %v595, 4
        %v597 = vadd.f32 %v595, %v596
        %v598 = vrot.slane %v597, 2
        %v599 = vadd.f32 %v597, %v598
        %v600 = vrot.slane %v599, 1
        %v601 = vadd.f32 %v599, %v600
        %v602 = vadd.f32 %v556, %v558
        %v603 = vrot.slane %v602, 4
        %v604 = vadd.f32 %v602, %v603
        %v605 = vrot.slane %v604, 2
        %v606 = vadd.f32 %v604, %v605
        %v607 = vrot.slane %v606, 1
        %v608 = vadd.f32 %v606, %v607
        %v609 = vadd.f32 %v557, %v559
        %v610 = vrot.slane %v609, 4
        %v611 = vadd.f32 %v609, %v610
        %v612 = vrot.slane %v611, 2
        %v613 = vadd.f32 %v611, %v612
        %v614 = vrot.slane %v613, 1
        %v615 = vadd.f32 %v613, %v614
        %v624 = vcombine.low %v566, %v573
        %v625 = vcombine.low %v580, %v587
        %v626 = vcombine.low %v594, %v601
        %v627 = vcombine.low %v608, %v615
        %v628 = vrot.slane %v625, 7
        %vm629 = vcmask 1041409
        %v630 = vsel %vm629, %v628, %v624
        %vm631 = vcmask 1045509
        %v632 = vsel %vm631, %v628, %v630
        %v633 = vrot.slane %v626, 6
        %vm634 = vcmask 1042434
        %v635 = vsel %vm634, %v633, %v632
        %vm636 = vcmask 1046534
        %v637 = vsel %vm636, %v633, %v635
        %v638 = vrot.slane %v627, 5
        %vm639 = vcmask 1043459
        %v640 = vsel %vm639, %v638, %v637
        %vm641 = vcmask 1047559
        %v642 = vsel %vm641, %v638, %v640
        %644 = vst [vmem:[%s225] sm:$0xff] %v642
        %s645 = sand.u32 %s121, 1
        %s646 = scalar_lea.sflag [#allocation3], %s645
        %s647 = sand.u32 %s121, 1
        %s648 = smul.addr %s647, 8
        %s649 = scalar_lea.vmem [#allocation2], %s648
        // Predicated region
        $region33: #{tpu_custom_call.1} parent=31 // pred_check
          %p650 = pneg %p131
        $region34: #{tpu_custom_call.1} parent=31 // pred_check_branch
          %652 = sbr.rel (%p650) target = $region36
        $region35: #{tpu_custom_call.1} parent=31 // pred_region
          %s653 = smul.u32 2, %s22
          %s655 = ssub.s32 128, 128
          %656 = vsyncadd %s646, %s655
          %s657 = smul.addr %s21, 2
          %s658 = sadd.s32 %s653, %s657
          %s659 = smul.addr %s658, 64
          %s660 = scalar_lea.hbm %s3, %s659
          %s662 = sshll.u32 %s649, 4
          %s663 = int_to_ptr.vmem [resolvable:$true] %s662
          %665 = dma.vmem_to_hbm [thread:$0]  %s663, 128, %s660, %s646
        $region36: #{tpu_custom_call.1} parent=31 // pred_fallthru
          _
      $region32: #{tpu_custom_call.1} parent=5 // pred_fallthru
        _
      %p666 = scmp.le.s32.totalorder 2, %s12
      // Predicated region
      $region37: #{tpu_custom_call.1} parent=5 // pred_check
        %p667 = pneg %p666
      $region38: #{tpu_custom_call.1} parent=5 // pred_check_branch
        %669 = sbr.rel (%p667) target = $region40
      $region39: #{tpu_custom_call.1} parent=5 // pred_region
        %s670 = ssub.s32 %s12, 2
        // Predicated region
        $region41: #{tpu_custom_call.1} parent=39 // pred_check
          %p671 = pneg %p137
        $region42: #{tpu_custom_call.1} parent=39 // pred_check_branch
          %673 = sbr.rel (%p671) target = $region44
        $region43: #{tpu_custom_call.1} parent=39 // pred_region
          %s674 = sand.u32 %s122, 1
          %s675 = scalar_lea.sflag [#allocation3], %s674
          %s676 = sand.u32 %s122, 1
          %s677 = smul.addr %s676, 8
          %s678 = scalar_lea.vmem [#allocation2], %s677
          %679 = dma.done %s675, 128
        $region44: #{tpu_custom_call.1} parent=39 // pred_fallthru
          _
      $region40: #{tpu_custom_call.1} parent=5 // pred_fallthru
        _
    $region6: #{tpu_custom_call.1} parent=1 // loop_footer
      %s16 = sadd.s32 1, %s12
    $region7: #{tpu_custom_call.1} parent=1 // loop_footer_branch
      %11 = sbr.rel target = $region3
    $region8: #{tpu_custom_call.1} parent=1 // loop_exit
      _
    %680 = vsyncpa [#allocation3], 1
    %s681 = scalar_lea.sflag [#allocation3], 1
    %682 = vsyncpa %s681, 1

// kernel: tpu_custom_call.1
$region0: #{tpu_custom_call.1}
  #allocation0 [shape = 'u32[]', space=smem, size = 0x4, offset = 0x4, fixed_abs, tag = 'smem constant byte address 0x4 - core index']
  #allocation1 [shape = 'u32[144,128]{1,0:T(1,128)}', space=vmem, size = 0x12000, scoped, tag = 'internal scratch']
  %s0 = inlined_call_operand.vmem [shape: f32[2,64,16], index: 0, kind: input, shape index: {}]
  %s1 = inlined_call_operand.vmem [shape: f32[2,1,256], index: 1, kind: input, shape index: {}]
  %s2 = inlined_call_operand.vmem [shape: f32[2,1,256], index: 2, kind: input, shape index: {}]
  %s3 = inlined_call_operand.hbm [shape: f32[2,4,256], index: 3, kind: output, shape index: {}]
  %s4 = sld [smem:[#allocation0]]
  $region45: #{tpu_custom_call.1} parent=0
    _
  %s6 = ssub.s32 1, %s4
  %s7 = scalar_select 0, %s6, %s4
  $region1: #{tpu_custom_call.1} parent=0
    #allocation2 [shape = 'u8[8192]{0}', space=vmem, size = 0x2000, scoped, tag = 'output window, operand 0']
    #allocation3 [shape = 's32[2]{0}', space=sflag, size = 0x8, scoped, tag = 'scoped memory for tpu_custom_call.1']
    %8 = vsyncpa [#allocation3], 0
    %s9 = scalar_lea.sflag [#allocation3], 1
    %10 = vsyncpa %s9, 0
    loop: start=0, step=1, limit=4
    $region2: #{tpu_custom_call.1} parent=1 // loop_pre_header
      _
    $region3: #{tpu_custom_call.1} parent=1 // loop_header
      %s12 = sphi 0, %s16
      %p13 = scmp.ge.s32.totalorder %s12, 4
      %s19 = sphi 0, %s31
      %s20 = sphi 0, %s27
      %s21 = sphi 0, %s19
      %s22 = sphi 0, %s20
      %s23 = sphi 0, %s21
      %s24 = sphi 0, %s22
      %s34 = sphi 0, %s36
      %s37 = sphi 0, %s34
      %s38 = sphi 0, %s37
      %s54 = sphi 0, %s38
      %s62 = sphi 0, %s64
      %s65 = sphi 0, %s62
      %s66 = sphi 0, %s65
      %s82 = sphi 0, %s66
      %s90 = sphi 0, %s92
      %s93 = sphi 0, %s90
      %s94 = sphi 0, %s93
      %s110 = sphi 0, %s94
      %s118 = sphi 0, %s120
      %s121 = sphi 0, %s118
      %s122 = sphi 0, %s121
      %s138 = sphi 0, %s122
    $region4: #{tpu_custom_call.1} parent=1 // loop_header_branch
      %15 = sbr.rel (%p13) target = $region8
    $region5: #{tpu_custom_call.1} parent=1 // loop_body
      %s17 = ssub.s32 %s12, 1
      %s18 = ssub.s32 %s12, 2
      %s25 = sadd.s32 1, %s20
      %p26 = scmp.ge.s32.totalorder %s25, 1
      %s27 = scalar_select %p26, 0, %s25
      %s28 = sadd.s32 1, %s19
      %s29 = scalar_select %p26, %s28, %s19
      %p30 = scmp.ge.s32.totalorder %s29, 2
      %s31 = scalar_select %p30, 0, %s29
      %s32 = ssub.s32 %s19, %s31
      %p33 = scmp.eq.s32.totalorder %s32, 0
      %s35 = sadd.s32 %s34, 1
      %s36 = scalar_select %p33, %s34, %s35
      %p39 = pneg %p33
      %p40 = scmp.eq.s32.totalorder %s12, 1
      %p41 = por %p39, %p40
      %p42 = scmp.ne.s32.totalorder %s34, %s37
      %p43 = scmp.eq.s32.totalorder %s12, 0
      %p44 = por %p42, %p43
      %p45 = scmp.ne.s32.totalorder %s34, %s37
      %p46 = scmp.eq.s32.totalorder %s17, 1
      %p47 = por %p45, %p46
      %p48 = scmp.ne.s32.totalorder %s37, %s38
      %p49 = scmp.eq.s32.totalorder %s17, 0
      %p50 = por %p48, %p49
      %p51 = scmp.ne.s32.totalorder %s37, %s38
      %p52 = scmp.eq.s32.totalorder %s18, 1
      %p53 = por %p51, %p52
      %p55 = scmp.ne.s32.totalorder %s38, %s54
      %p56 = scmp.eq.s32.totalorder %s18, 0
      %p57 = por %p55, %p56
      %s58 = ssub.s32 %s19, %s31
      %s59 = ssub.s32 %s20, %s27
      %s60 = sor.u32 %s58, %s59
      %p61 = scmp.eq.s32.totalorder %s60, 0
      %s63 = sadd.s32 %s62, 1
      %s64 = scalar_select %p61, %s62, %s63
      %p67 = pneg %p61
      %p68 = scmp.eq.s32.totalorder %s12, 1
      %p69 = por %p67, %p68
      %p70 = scmp.ne.s32.totalorder %s62, %s65
      %p71 = scmp.eq.s32.totalorder %s12, 0
      %p72 = por %p70, %p71
      %p73 = scmp.ne.s32.totalorder %s62, %s65
      %p74 = scmp.eq.s32.totalorder %s17, 1
      %p75 = por %p73, %p74
      %p76 = scmp.ne.s32.totalorder %s65, %s66
      %p77 = scmp.eq.s32.totalorder %s17, 0
      %p78 = por %p76, %p77
      %p79 = scmp.ne.s32.totalorder %s65, %s66
      %p80 = scmp.eq.s32.totalorder %s18, 1
      %p81 = por %p79, %p80
      %p83 = scmp.ne.s32.totalorder %s66, %s82
      %p84 = scmp.eq.s32.totalorder %s18, 0
      %p85 = por %p83, %p84
      %s86 = ssub.s32 %s19, %s31
      %s87 = ssub.s32 %s20, %s27
      %s88 = sor.u32 %s86, %s87
      %p89 = scmp.eq.s32.totalorder %s88, 0
      %s91 = sadd.s32 %s90, 1
      %s92 = scalar_select %p89, %s90, %s91
      %p95 = pneg %p89
      %p96 = scmp.eq.s32.totalorder %s12, 1
      %p97 = por %p95, %p96
      %p98 = scmp.ne.s32.totalorder %s90, %s93
      %p99 = scmp.eq.s32.totalorder %s12, 0
      %p100 = por %p98, %p99
      %p101 = scmp.ne.s32.totalorder %s90, %s93
      %p102 = scmp.eq.s32.totalorder %s17, 1
      %p103 = por %p101, %p102
      %p104 = scmp.ne.s32.totalorder %s93, %s94
      %p105 = scmp.eq.s32.totalorder %s17, 0
      %p106 = por %p104, %p105
      %p107 = scmp.ne.s32.totalorder %s93, %s94
      %p108 = scmp.eq.s32.totalorder %s18, 1
      %p109 = por %p107, %p108
      %p111 = scmp.ne.s32.totalorder %s94, %s110
      %p112 = scmp.eq.s32.totalorder %s18, 0
      %p113 = por %p111, %p112
      %s114 = ssub.s32 %s19, %s31
      %s115 = ssub.s32 %s20, %s27
      %s116 = sor.u32 %s114, %s115
      %p117 = scmp.eq.s32.totalorder %s116, 0
      %s119 = sadd.s32 %s118, 1
      %s120 = scalar_select %p117, %s118, %s119
      %p123 = pneg %p117
      %p124 = scmp.eq.s32.totalorder %s12, 1
      %p125 = por %p123, %p124
      %p126 = scmp.ne.s32.totalorder %s118, %s121
      %p127 = scmp.eq.s32.totalorder %s12, 0
      %p128 = por %p126, %p127
      %p129 = scmp.ne.s32.totalorder %s118, %s121
      %p130 = scmp.eq.s32.totalorder %s17, 1
      %p131 = por %p129, %p130
      %p132 = scmp.ne.s32.totalorder %s121, %s122
      %p133 = scmp.eq.s32.totalorder %s17, 0
      %p134 = por %p132, %p133
      %p135 = scmp.ne.s32.totalorder %s121, %s122
      %p136 = scmp.eq.s32.totalorder %s18, 1
      %p137 = por %p135, %p136
      %p139 = scmp.ne.s32.totalorder %s122, %s138
      %p140 = scmp.eq.s32.totalorder %s18, 0
      %p141 = por %p139, %p140
      %p142 = scmp.le.s32.totalorder 1, %s12
      %p143 = scmp.lt.s32.totalorder %s12, 3
      %p144 = pnand %p142, %p143
      %p145 = pneg %p144
      // Predicated region
      $region9: #{tpu_custom_call.1} parent=5 // pred_check
        _
      $region10: #{tpu_custom_call.1} parent=5 // pred_check_branch
        %147 = sbr.rel (%p144) target = $region12
      $region11: #{tpu_custom_call.1} parent=5 // pred_region
        %s148 = ssub.s32 %s12, 1
      $region12: #{tpu_custom_call.1} parent=5 // pred_fallthru
        _
      %p149 = scmp.lt.s32.totalorder %s12, 2
      // Predicated region
      $region13: #{tpu_custom_call.1} parent=5 // pred_check
        %p150 = pneg %p149
      $region14: #{tpu_custom_call.1} parent=5 // pred_check_branch
        %152 = sbr.rel (%p150) target = $region16
      $region15: #{tpu_custom_call.1} parent=5 // pred_region
        // Predicated region
        $region17: #{tpu_custom_call.1} parent=15 // pred_check
          %p153 = pneg %p44
        $region18: #{tpu_custom_call.1} parent=15 // pred_check_branch
          %155 = sbr.rel (%p153) target = $region20
        $region19: #{tpu_custom_call.1} parent=15 // pred_region
          %p156 = scmp.lt.s32.totalorder %s19, 1
          %s157 = scalar_select %p156, %s19, 1
          %s158 = smul.addr %s157, 8
          %s159 = smul.addr %s158, 8
          %s160 = scalar_lea.vmem %s0, %s159
        $region20: #{tpu_custom_call.1} parent=15 // pred_fallthru
          _
        // Predicated region
        $region21: #{tpu_custom_call.1} parent=15 // pred_check
          %p161 = pneg %p72
        $region22: #{tpu_custom_call.1} parent=15 // pred_check_branch
          %163 = sbr.rel (%p161) target = $region24
        $region23: #{tpu_custom_call.1} parent=15 // pred_region
          %s164 = smul.u32 2, %s20
          %p165 = scmp.lt.s32.totalorder %s19, 1
          %s166 = scalar_select %p165, %s19, 1
          %p167 = scmp.lt.s32.totalorder %s164, 1
          %s168 = scalar_select %p167, %s164, 1
          %s169 = smul.addr %s166, 2
          %s170 = sadd.s32 %s168, %s169
          %s171 = scalar_lea.vmem %s1, %s170
          %s172 = smul.u32 2, %s20
        $region24: #{tpu_custom_call.1} parent=15 // pred_fallthru
          _
        // Predicated region
        $region25: #{tpu_custom_call.1} parent=15 // pred_check
          %p173 = pneg %p100
        $region26: #{tpu_custom_call.1} parent=15 // pred_check_branch
          %175 = sbr.rel (%p173) target = $region28
        $region27: #{tpu_custom_call.1} parent=15 // pred_region
          %s176 = smul.u32 2, %s20
          %p177 = scmp.lt.s32.totalorder %s19, 1
          %s178 = scalar_select %p177, %s19, 1
          %p179 = scmp.lt.s32.totalorder %s176, 1
          %s180 = scalar_select %p179, %s176, 1
          %s181 = smul.addr %s178, 2
          %s182 = sadd.s32 %s180, %s181
          %s183 = scalar_lea.vmem %s2, %s182
          %s184 = smul.u32 2, %s20
        $region28: #{tpu_custom_call.1} parent=15 // pred_fallthru
          _
      $region16: #{tpu_custom_call.1} parent=5 // pred_fallthru
        _
      %p185 = scmp.le.s32.totalorder 1, %s12
      %p186 = scmp.lt.s32.totalorder %s12, 3
      %p187 = pnand %p185, %p186
      %p188 = pneg %p187
      // Predicated region
      $region29: #{tpu_custom_call.1} parent=5 // pred_check
        _
      $region30: #{tpu_custom_call.1} parent=5 // pred_check_branch
        %190 = sbr.rel (%p187) target = $region32
      $region31: #{tpu_custom_call.1} parent=5 // pred_region
        %s191 = ssub.s32 %s12, 1
        %p192 = scmp.lt.s32.totalorder %s21, 1
        %s193 = scalar_select %p192, %s21, 1
        %s194 = smul.addr %s193, 8
        %s195 = smul.addr %s194, 8
        %s196 = scalar_lea.vmem %s0, %s195
        %p197 = pneg %p50
        %p198 = pneg %p47
        %s199 = smul.u32 2, %s22
        %p200 = scmp.lt.s32.totalorder %s21, 1
        %s201 = scalar_select %p200, %s21, 1
        %p202 = scmp.lt.s32.totalorder %s199, 1
        %s203 = scalar_select %p202, %s199, 1
        %s204 = smul.addr %s201, 2
        %s205 = sadd.s32 %s203, %s204
        %s206 = scalar_lea.vmem %s1, %s205
        %p207 = pneg %p78
        %p208 = pneg %p75
        %s209 = smul.u32 2, %s22
        %p210 = scmp.lt.s32.totalorder %s21, 1
        %s211 = scalar_select %p210, %s21, 1
        %p212 = scmp.lt.s32.totalorder %s209, 1
        %s213 = scalar_select %p212, %s209, 1
        %s214 = smul.addr %s211, 2
        %s215 = sadd.s32 %s213, %s214
        %s216 = scalar_lea.vmem %s2, %s215
        %p217 = pneg %p106
        %p218 = pneg %p103
        %p219 = pneg %p134
        %p220 = pneg %p131
        %s221 = sand.u32 %s121, 1
        %s222 = scalar_lea.sflag [#allocation3], %s221
        %s223 = sand.u32 %s121, 1
        %s224 = smul.addr %s223, 8
        %s225 = scalar_lea.vmem [#allocation2], %s224
        %p226 = scmp.lt.s32.totalorder %s21, 1
        %s227 = scalar_select %p226, %s21, 1
        %s228 = smul.addr %s227, 8
        %s229 = smul.addr %s228, 8
        %s230 = scalar_lea.vmem %s0, %s229
        %s231 = smul.u32 2, %s22
        %p232 = scmp.lt.s32.totalorder %s21, 1
        %s233 = scalar_select %p232, %s21, 1
        %p234 = scmp.lt.s32.totalorder %s231, 1
        %s235 = scalar_select %p234, %s231, 1
        %s236 = smul.addr %s233, 2
        %s237 = sadd.s32 %s235, %s236
        %s238 = scalar_lea.vmem %s1, %s237
        %s239 = smul.u32 2, %s22
        %s240 = smul.u32 2, %s22
        %p241 = scmp.lt.s32.totalorder %s21, 1
        %s242 = scalar_select %p241, %s21, 1
        %p243 = scmp.lt.s32.totalorder %s240, 1
        %s244 = scalar_select %p243, %s240, 1
        %s245 = smul.addr %s242, 2
        %s246 = sadd.s32 %s244, %s245
        %s247 = scalar_lea.vmem %s2, %s246
        %s248 = smul.u32 2, %s22
        %s249 = smul.u32 2, %s22
        %v250 = vld [vmem:[%s238] sm:$0x3]
        %v251 = vld [vmem:[%s247] sm:$0x3]
        %v252 = vfloor.f32 %v250
        %v253 = vmax.f32 %v252, 0.0
        %v254 = vmin.f32 %v253, 15.0
        %v255 = vfloor.f32 %v251
        %v256 = vmax.f32 %v255, 0.0
        %v257 = vmin.f32 %v256, 15.0
        %v258 = vcvt.f32.s32.to.zero.pseudo %v254
        %v259 = vcvt.f32.s32.to.zero.pseudo %v257
        %v260 = vadd.s32 %v258, 1
        %vm261 = vcmp.lt.s32.totalorder %v260, 15
        %v262 = vsel %vm261, %v260, 15
        %v263 = vadd.s32 %v259, 1
        %vm264 = vcmp.lt.s32.totalorder %v263, 15
        %v265 = vsel %vm264, %v263, 15
        %v266 = vsub.f32 %v250, %v254
        %v267 = vsub.f32 %v251, %v257
        %v268 = vsub.f32 1.0, %v266
        %v269 = vsub.f32 1.0, %v267
        %vm270 = vcmp.ge.f32.partialorder %v250, 0.0
        %vm271 = vcmp.lt.f32.partialorder %v250, 16.0
        %vm272 = vmand %vm270, %vm271
        %vm273 = vcmp.ge.f32.partialorder %v251, 0.0
        %vm274 = vmand %vm272, %vm273
        %vm275 = vcmp.lt.f32.partialorder %v251, 16.0
        %vm276 = vmand %vm274, %vm275
        %v277 = vsel %vm276, 1, 0
        %v278 = vcvt.s32.f32 %v277
        %v279 = vmul.f32 %v269, %v278
        %v280 = vmul.f32 %v267, %v278
        %vm281 = vcmp.eq.s32.totalorder %v262, %v258
        %v282 = vadd.f32 %v268, %v266
        %v283 = vsel %vm281, %v282, %v268
        %vm284 = vcmp.eq.s32.totalorder %v265, %v259
        %v285 = vadd.f32 %v279, %v280
        %v286 = vsel %vm284, %v285, %v279
        %v287 = vlaneseq
        %v288 = vshrl.u32 %v287, 7
        %v289 = vadd.s32 %v288, 8
        %v290 = vlaneseq
        %v291 = vshrl.u32 %v290, 7
        %v292 = vsub.s32 0, %v291
        %v293 = vrot.slane %v258, %v292
        %v294 = vlaneseq
        %v295 = vshrl.u32 %v294, 7
        %v296 = vsub.s32 1, %v295
        %v297 = vrot.slane %v258, %v296
        %vm298 = vcmp.eq.s32.totalorder %v288, %v293
        %vm299 = vcmp.eq.s32.totalorder %v288, %v297
        %vm300 = vcmp.eq.s32.totalorder %v289, %v293
        %vm301 = vcmp.eq.s32.totalorder %v289, %v297
        %v302 = vlaneseq
        %v303 = vshrl.u32 %v302, 7
        %v304 = vsub.s32 0, %v303
        %v305 = vrot.slane %v262, %v304
        %v306 = vlaneseq
        %v307 = vshrl.u32 %v306, 7
        %v308 = vsub.s32 1, %v307
        %v309 = vrot.slane %v262, %v308
        %vm310 = vcmp.eq.s32.totalorder %v288, %v305
        %vm311 = vcmp.eq.s32.totalorder %v288, %v309
        %vm312 = vcmp.eq.s32.totalorder %v289, %v305
        %vm313 = vcmp.eq.s32.totalorder %v289, %v309
        %v315 = vlaneseq
        %v316 = vshrl.u32 %v315, 7
        %v317 = vsub.s32 0, %v316
        %v318 = vrot.slane %v266, %v317
        %v319 = vlaneseq
        %v320 = vshrl.u32 %v319, 7
        %v321 = vsub.s32 1, %v320
        %v322 = vrot.slane %v266, %v321
        %v325 = vsel %vm310, %v318, 0.0
        %v326 = vsel %vm311, %v322, 0.0
        %v327 = vsel %vm312, %v318, 0.0
        %v328 = vsel %vm313, %v322, 0.0
        %v330 = vlaneseq
        %v331 = vshrl.u32 %v330, 7
        %v332 = vsub.s32 0, %v331
        %v333 = vrot.slane %v283, %v332
        %v334 = vlaneseq
        %v335 = vshrl.u32 %v334, 7
        %v336 = vsub.s32 1, %v335
        %v337 = vrot.slane %v283, %v336
        %v340 = vsel %vm298, %v333, %v325
        %v341 = vsel %vm299, %v337, %v326
        %v342 = vsel %vm300, %v333, %v327
        %v343 = vsel %vm301, %v337, %v328
        %v344 = vlaneseq
        %v345 = vshrl.u32 %v344, 7
        %v346 = vsub.s32 0, %v345
        %v347 = vrot.slane %v259, %v346
        %v348 = vlaneseq
        %v349 = vshrl.u32 %v348, 7
        %v350 = vsub.s32 1, %v349
        %v351 = vrot.slane %v259, %v350
        %vm352 = vcmp.eq.s32.totalorder %v288, %v347
        %vm353 = vcmp.eq.s32.totalorder %v288, %v351
        %vm354 = vcmp.eq.s32.totalorder %v289, %v347
        %vm355 = vcmp.eq.s32.totalorder %v289, %v351
        %v356 = vlaneseq
        %v357 = vshrl.u32 %v356, 7
        %v358 = vsub.s32 0, %v357
        %v359 = vrot.slane %v265, %v358
        %v360 = vlaneseq
        %v361 = vshrl.u32 %v360, 7
        %v362 = vsub.s32 1, %v361
        %v363 = vrot.slane %v265, %v362
        %vm364 = vcmp.eq.s32.totalorder %v288, %v359
        %vm365 = vcmp.eq.s32.totalorder %v288, %v363
        %vm366 = vcmp.eq.s32.totalorder %v289, %v359
        %vm367 = vcmp.eq.s32.totalorder %v289, %v363
        %v369 = vlaneseq
        %v370 = vshrl.u32 %v369, 7
        %v371 = vsub.s32 0, %v370
        %v372 = vrot.slane %v280, %v371
        %v373 = vlaneseq
        %v374 = vshrl.u32 %v373, 7
        %v375 = vsub.s32 1, %v374
        %v376 = vrot.slane %v280, %v375
        %v379 = vsel %vm364, %v372, 0.0
        %v380 = vsel %vm365, %v376, 0.0
        %v381 = vsel %vm366, %v372, 0.0
        %v382 = vsel %vm367, %v376, 0.0
        %v384 = vlaneseq
        %v385 = vshrl.u32 %v384, 7
        %v386 = vsub.s32 0, %v385
        %v387 = vrot.slane %v286, %v386
        %v388 = vlaneseq
        %v389 = vshrl.u32 %v388, 7
        %v390 = vsub.s32 1, %v389
        %v391 = vrot.slane %v286, %v390
        %v394 = vsel %vm352, %v387, %v379
        %v395 = vsel %vm353, %v391, %v380
        %v396 = vsel %vm354, %v387, %v381
        %v397 = vsel %vm355, %v391, %v382
        %v398 = vld [vmem:[%s230] sm:$0xff]
        %v399 = vld [vmem:[%s230 + $0x8] sm:$0xff]
        %v400 = vld [vmem:[%s230 + $0x10] sm:$0xff]
        %v401 = vld [vmem:[%s230 + $0x18] sm:$0xff]
        %v402 = vld [vmem:[%s230 + $0x20] sm:$0xff]
        %v403 = vld [vmem:[%s230 + $0x28] sm:$0xff]
        %v404 = vld [vmem:[%s230 + $0x30] sm:$0xff]
        %v405 = vld [vmem:[%s230 + $0x38] sm:$0xff]
        %vm406 = vcmask 130048
        %v408 = vsel %vm406, %v398, 0
        %v411 = vsel %vm406, %v399, 0
        %v414 = vsel %vm406, %v400, 0
        %v417 = vsel %vm406, %v401, 0
        %v420 = vsel %vm406, %v402, 0
        %v423 = vsel %vm406, %v403, 0
        %v426 = vsel %vm406, %v404, 0
        %v429 = vsel %vm406, %v405, 0
        %431 = vmatprep.subr.mxu0 %v341
        %432 = vmatpush1.msra.mxu0 %v340
        %433 = vmatprep.subr.mxu0 %v343
        %434 = vmatpush1.msra.mxu0 %v342
        %435 = vmatprep.subr.mxu0 0.0
        %436 = vmatpush1.msra.mxu0 0.0
        %437 = vmatprep.subr.mxu0 0.0
        %438 = vmatpush1.msra.mxu0 0.0
        %439 = vmatprep.subr.mxu0 0.0
        %440 = vmatpush1.msra.mxu0 0.0
        %441 = vmatprep.subr.mxu0 0.0
        %442 = vmatpush1.msra.mxu0 0.0
        %443 = vmatprep.subr.mxu0 0.0
        %444 = vmatpush1.msra.mxu0 0.0
        %445 = vmatprep.subr.mxu0 0.0
        %446 = vmatpush1.msra.mxu0 0.0
        %447 = vmatprep.subr.mxu0 0.0
        %448 = vmatpush1.msra.mxu0 0.0
        %449 = vmatprep.subr.mxu0 0.0
        %450 = vmatpush1.msra.mxu0 0.0
        %451 = vmatprep.subr.mxu0 0.0
        %452 = vmatpush1.msra.mxu0 0.0
        %453 = vmatprep.subr.mxu0 0.0
        %454 = vmatpush1.msra.mxu0 0.0
        %455 = vmatprep.subr.mxu0 0.0
        %456 = vmatpush1.msra.mxu0 0.0
        %457 = vmatprep.subr.mxu0 0.0
        %458 = vmatpush1.msra.mxu0 0.0
        %459 = vmatprep.subr.mxu0 0.0
        %460 = vmatpush1.msra.mxu0 0.0
        %461 = vmatprep.subr.mxu0 0.0
        %462 = vmatpush1.msra.mxu0 0.0
        %463 = vmatprep.subr.mxu0 0.0
        %464 = vmatpush1.msra.mxu0 0.0
        %465 = vmatprep.subr.mxu0 0.0
        %466 = vmatpush1.msra.mxu0 0.0
        %467 = vmatprep.subr.mxu0 0.0
        %468 = vmatpush1.msra.mxu0 0.0
        %469 = vmatprep.subr.mxu0 0.0
        %470 = vmatpush1.msra.mxu0 0.0
        %471 = vmatprep.subr.mxu0 0.0
        %472 = vmatpush1.msra.mxu0 0.0
        %473 = vmatprep.subr.mxu0 0.0
        %474 = vmatpush1.msra.mxu0 0.0
        %475 = vmatprep.subr.mxu0 0.0
        %476 = vmatpush1.msra.mxu0 0.0
        %477 = vmatprep.subr.mxu0 0.0
        %478 = vmatpush1.msra.mxu0 0.0
        %479 = vmatprep.subr.mxu0 0.0
        %480 = vmatpush1.msra.mxu0 0.0
        %481 = vmatprep.subr.mxu0 0.0
        %482 = vmatpush1.msra.mxu0 0.0
        %483 = vmatprep.subr.mxu0 0.0
        %484 = vmatpush1.msra.mxu0 0.0
        %485 = vmatprep.subr.mxu0 0.0
        %486 = vmatpush1.msra.mxu0 0.0
        %487 = vmatprep.subr.mxu0 0.0
        %488 = vmatpush1.msra.mxu0 0.0
        %489 = vmatprep.subr.mxu0 0.0
        %490 = vmatpush1.msra.mxu0 0.0
        %491 = vmatprep.subr.mxu0 0.0
        %492 = vmatpush1.msra.mxu0 0.0
        %493 = vmatprep.subr.mxu0 0.0
        %494 = vmatpush1.msra.mxu0 0.0
        %495 = vmatprep.mubr.f32.mxu0 0.0
        %496 = vmatmul.mubr.f32.gmra.mrb[0].mxu0 %v408
        %v497 = vpop.f32.mrb[0].mxu0
        %v498 = vadd.f32 0.0, %v497
        %v499 = vpop.f32.mrb[0].mxu0
        %v500 = vadd.f32 0.0, %v499
        %501 = vmatprep.mubr.f32.mxu0 0.0
        %502 = vmatmul.mubr.f32.gmra.mrb[0].mxu0 %v411
        %v503 = vpop.f32.mrb[0].mxu0
        %v504 = vadd.f32 0.0, %v503
        %v505 = vpop.f32.mrb[0].mxu0
        %v506 = vadd.f32 0.0, %v505
        %507 = vmatprep.mubr.f32.mxu0 0.0
        %508 = vmatmul.mubr.f32.gmra.mrb[0].mxu0 %v414
        %v509 = vpop.f32.mrb[0].mxu0
        %v510 = vadd.f32 0.0, %v509
        %v511 = vpop.f32.mrb[0].mxu0
        %v512 = vadd.f32 0.0, %v511
        %513 = vmatprep.mubr.f32.mxu0 0.0
        %514 = vmatmul.mubr.f32.gmra.mrb[0].mxu0 %v417
        %v515 = vpop.f32.mrb[0].mxu0
        %v516 = vadd.f32 0.0, %v515
        %v517 = vpop.f32.mrb[0].mxu0
        %v518 = vadd.f32 0.0, %v517
        %519 = vmatprep.mubr.f32.mxu0 0.0
        %520 = vmatmul.mubr.f32.gmra.mrb[0].mxu0 %v420
        %v521 = vpop.f32.mrb[0].mxu0
        %v522 = vadd.f32 0.0, %v521
        %v523 = vpop.f32.mrb[0].mxu0
        %v524 = vadd.f32 0.0, %v523
        %525 = vmatprep.mubr.f32.mxu0 0.0
        %526 = vmatmul.mubr.f32.gmra.mrb[0].mxu0 %v423
        %v527 = vpop.f32.mrb[0].mxu0
        %v528 = vadd.f32 0.0, %v527
        %v529 = vpop.f32.mrb[0].mxu0
        %v530 = vadd.f32 0.0, %v529
        %531 = vmatprep.mubr.f32.mxu0 0.0
        %532 = vmatmul.mubr.f32.gmra.mrb[0].mxu0 %v426
        %v533 = vpop.f32.mrb[0].mxu0
        %v534 = vadd.f32 0.0, %v533
        %v535 = vpop.f32.mrb[0].mxu0
        %v536 = vadd.f32 0.0, %v535
        %537 = vmatprep.mubr.f32.mxu0 0.0
        %538 = vmatmul.mubr.f32.gmra.mrb[0].mxu0 %v429
        %v539 = vpop.f32.mrb[0].mxu0
        %v540 = vadd.f32 0.0, %v539
        %v541 = vpop.f32.mrb[0].mxu0
        %v542 = vadd.f32 0.0, %v541
        %543 = vdwg.mxu0
        %v544 = vmul.f32 %v498, %v394
        %v545 = vmul.f32 %v500, %v395
        %v546 = vmul.f32 %v504, %v396
        %v547 = vmul.f32 %v506, %v397
        %v548 = vmul.f32 %v510, %v394
        %v549 = vmul.f32 %v512, %v395
        %v550 = vmul.f32 %v516, %v396
        %v551 = vmul.f32 %v518, %v397
        %v552 = vmul.f32 %v522, %v394
        %v553 = vmul.f32 %v524, %v395
        %v554 = vmul.f32 %v528, %v396
        %v555 = vmul.f32 %v530, %v397
        %v556 = vmul.f32 %v534, %v394
        %v557 = vmul.f32 %v536, %v395
        %v558 = vmul.f32 %v540, %v396
        %v559 = vmul.f32 %v542, %v397
        %v560 = vadd.f32 %v544, %v546
        %v561 = vrot.slane %v560, 4
        %v562 = vadd.f32 %v560, %v561
        %v563 = vrot.slane %v562, 2
        %v564 = vadd.f32 %v562, %v563
        %v565 = vrot.slane %v564, 1
        %v566 = vadd.f32 %v564, %v565
        %v567 = vadd.f32 %v545, %v547
        %v568 = vrot.slane %v567, 4
        %v569 = vadd.f32 %v567, %v568
        %v570 = vrot.slane %v569, 2
        %v571 = vadd.f32 %v569, %v570
        %v572 = vrot.slane %v571, 1
        %v573 = vadd.f32 %v571, %v572
        %v574 = vadd.f32 %v548, %v550
        %v575 = vrot.slane %v574, 4
        %v576 = vadd.f32 %v574, %v575
        %v577 = vrot.slane %v576, 2
        %v578 = vadd.f32 %v576, %v577
        %v579 = vrot.slane %v578, 1
        %v580 = vadd.f32 %v578, %v579
        %v581 = vadd.f32 %v549, %v551
        %v582 = vrot.slane %v581, 4
        %v583 = vadd.f32 %v581, %v582
        %v584 = vrot.slane %v583, 2
        %v585 = vadd.f32 %v583, %v584
        %v586 = vrot.slane %v585, 1
        %v587 = vadd.f32 %v585, %v586
        %v588 = vadd.f32 %v552, %v554
        %v589 = vrot.slane %v588, 4
        %v590 = vadd.f32 %v588, %v589
        %v591 = vrot.slane %v590, 2
        %v592 = vadd.f32 %v590, %v591
        %v593 = vrot.slane %v592, 1
        %v594 = vadd.f32 %v592, %v593
        %v595 = vadd.f32 %v553, %v555
        %v596 = vrot.slane %v595, 4
        %v597 = vadd.f32 %v595, %v596
        %v598 = vrot.slane %v597, 2
        %v599 = vadd.f32 %v597, %v598
        %v600 = vrot.slane %v599, 1
        %v601 = vadd.f32 %v599, %v600
        %v602 = vadd.f32 %v556, %v558
        %v603 = vrot.slane %v602, 4
        %v604 = vadd.f32 %v602, %v603
        %v605 = vrot.slane %v604, 2
        %v606 = vadd.f32 %v604, %v605
        %v607 = vrot.slane %v606, 1
        %v608 = vadd.f32 %v606, %v607
        %v609 = vadd.f32 %v557, %v559
        %v610 = vrot.slane %v609, 4
        %v611 = vadd.f32 %v609, %v610
        %v612 = vrot.slane %v611, 2
        %v613 = vadd.f32 %v611, %v612
        %v614 = vrot.slane %v613, 1
        %v615 = vadd.f32 %v613, %v614
        %v624 = vcombine.low %v566, %v573
        %v625 = vcombine.low %v580, %v587
        %v626 = vcombine.low %v594, %v601
        %v627 = vcombine.low %v608, %v615
        %v628 = vrot.slane %v625, 7
        %vm629 = vcmask 1041409
        %v630 = vsel %vm629, %v628, %v624
        %vm631 = vcmask 1045509
        %v632 = vsel %vm631, %v628, %v630
        %v633 = vrot.slane %v626, 6
        %vm634 = vcmask 1042434
        %v635 = vsel %vm634, %v633, %v632
        %vm636 = vcmask 1046534
        %v637 = vsel %vm636, %v633, %v635
        %v638 = vrot.slane %v627, 5
        %vm639 = vcmask 1043459
        %v640 = vsel %vm639, %v638, %v637
        %vm641 = vcmask 1047559
        %v642 = vsel %vm641, %v638, %v640
        %644 = vst [vmem:[%s225] sm:$0xff] %v642
        %s645 = sand.u32 %s121, 1
        %s646 = scalar_lea.sflag [#allocation3], %s645
        %s647 = sand.u32 %s121, 1
        %s648 = smul.addr %s647, 8
        %s649 = scalar_lea.vmem [#allocation2], %s648
        // Predicated region
        $region33: #{tpu_custom_call.1} parent=31 // pred_check
          %p650 = pneg %p131
        $region34: #{tpu_custom_call.1} parent=31 // pred_check_branch
          %652 = sbr.rel (%p650) target = $region36
        $region35: #{tpu_custom_call.1} parent=31 // pred_region
          %s653 = smul.u32 2, %s22
          %s655 = ssub.s32 128, 128
          %656 = vsyncadd %s646, %s655
          %s657 = smul.addr %s21, 2
          %s658 = sadd.s32 %s653, %s657
          %s659 = smul.addr %s658, 64
          %s660 = scalar_lea.hbm %s3, %s659
          %s662 = sshll.u32 %s649, 4
          %s663 = int_to_ptr.vmem [resolvable:$true] %s662
          %665 = dma.vmem_to_hbm [thread:$0]  %s663, 128, %s660, %s646
        $region36: #{tpu_custom_call.1} parent=31 // pred_fallthru
          _
      $region32: #{tpu_custom_call.1} parent=5 // pred_fallthru
        _
      %p666 = scmp.le.s32.totalorder 2, %s12
      // Predicated region
      $region37: #{tpu_custom_call.1} parent=5 // pred_check
        %p667 = pneg %p666
      $region38: #{tpu_custom_call.1} parent=5 // pred_check_branch
        %669 = sbr.rel (%p667) target = $region40
      $region39: #{tpu_custom_call.1} parent=5 // pred_region
        %s670 = ssub.s32 %s12, 2
        // Predicated region
        $region41: #{tpu_custom_call.1} parent=39 // pred_check
          %p671 = pneg %p137
        $region42: #{tpu_custom_call.1} parent=39 // pred_check_branch
          %673 = sbr.rel (%p671) target = $region44
        $region43: #{tpu_custom_call.1} parent=39 // pred_region
          %s674 = sand.u32 %s122, 1
          %s675 = scalar_lea.sflag [#allocation3], %s674
          %s676 = sand.u32 %s122, 1
          %s677 = smul.addr %s676, 8
          %s678 = scalar_lea.vmem [#allocation2], %s677
          %679 = dma.done %s675, 128
        $region44: #{tpu_custom_call.1} parent=39 // pred_fallthru
          _
      $region40: #{tpu_custom_call.1} parent=5 // pred_fallthru
        _
    $region6: #{tpu_custom_call.1} parent=1 // loop_footer
      %s16 = sadd.s32 1, %s12
    $region7: #{tpu_custom_call.1} parent=1 // loop_footer_branch
      %11 = sbr.rel target = $region3
    $region8: #{tpu_custom_call.1} parent=1 // loop_exit
      _
    %680 = vsyncpa [#allocation3], 1
    %s681 = scalar_lea.sflag [#allocation3], 1
    %682 = vsyncpa %s681, 1

</llo_original>
